<compile_context>
chip_gen: v7x
topology: tpu7x:2x2x1
jax: 0.10.0
libtpu: 0.0.40
codegen_flags: <defaults>
</compile_context>

<pallas_src>
import jax
import jax.numpy as jnp
from jax.experimental import pallas as pl
from jax.experimental.pallas import tpu as pltpu


def _round_up(x, m):
    return ((x + m - 1) // m) * m


# ------------------------------------------------------------------ kernel ---
def conv_gemm_add_kernel(p_ref, w_ref, t_ref, o_ref, acc_ref):
    # p_ref: (TM, TK)  im2col patch tile
    # w_ref: (TK, Cp)  flattened conv weight tile (resident across M tiles)
    # t_ref: (TM, Cp)  (t2 + bias) tile
    # o_ref: (TM, Cp)  output tile
    # acc_ref: VMEM f32 accumulator, carried across the K grid axis
    k = pl.program_id(1)

    @pl.when(k == 0)
    def _():
        acc_ref[...] = jnp.zeros_like(acc_ref)

    acc_ref[...] += jnp.dot(p_ref[...], w_ref[...],
                            preferred_element_type=jnp.float32)

    @pl.when(k == pl.num_programs(1) - 1)
    def _():
        o_ref[...] = (acc_ref[...] + t_ref[...]).astype(o_ref.dtype)


def _pallas_conv_gemm_add(patches, w2d, t2d, *, tm, tk):
    """patches: (Mp, Kp), w2d: (Kp, Cp), t2d: (Mp, Cp); all padded/aligned."""
    Mp, Kp = patches.shape
    Cp = w2d.shape[1]
    assert Mp % tm == 0 and Kp % tk == 0 and Cp % 128 == 0 and tm % 8 == 0

    grid = (Mp // tm, Kp // tk)
    return pl.pallas_call(
        conv_gemm_add_kernel,
        out_shape=jax.ShapeDtypeStruct((Mp, Cp), jnp.float32),
        grid=grid,
        in_specs=[
            pl.BlockSpec((tm, tk), lambda i, k: (i, k)),   # patches tile
            pl.BlockSpec((tk, Cp), lambda i, k: (k, 0)),   # weight (const over i)
            pl.BlockSpec((tm, Cp), lambda i, k: (i, 0)),   # t2 (+bias) tile
        ],
        out_specs=pl.BlockSpec((tm, Cp), lambda i, k: (i, 0)),
        scratch_shapes=[pltpu.VMEM((tm, Cp), jnp.float32)],
        compiler_params=pltpu.CompilerParams(
            # M tiles are independent -> parallel (shards across v7x's 2 TCs);
            # K is a carried reduction -> arbitrary, kept last.
            dimension_semantics=("parallel", "arbitrary"),
            # Explicit budget: tiles are ~4 MiB double-buffered, well under the
            # 32 MiB scoped default on every generation (incl. v7x's 64 MiB phys).
            vmem_limit_bytes=32 * 1024 * 1024,
        ),
    )(patches, w2d, t2d)


# ---------------------------------------------------------------- wrapper ----
def model_forward(x1, t2, weight, bias, *, stride, padding,
                  tm_max=512, tk_max=512):
    """x1: (N, Cin, H, W) NCHW; t2: (N, Cout, OH, OW); returns (N, Cout, OH, OW)."""
    N, Cin, H, W = x1.shape
    Cout, _, KH, KW = weight.shape
    OH = (H + 2 * padding - KH) // stride + 1
    OW = (W + 2 * padding - KW) // stride + 1
    M = N * OH * OW
    Kfeat = Cin * KH * KW

    # --- im2col (glue; patch rows laid out NHWC so the kernel output is
    #     lane-dense over channels) ---
    xp = jnp.pad(x1, ((0, 0), (0, 0), (padding, padding), (padding, padding)))
    cols = []
    for kh in range(KH):
        for kw in range(KW):
            cols.append(xp[:, :, kh:kh + stride * OH:stride,
                               kw:kw + stride * OW:stride])   # (N, Cin, OH, OW)
    # feature order must match PyTorch weight flatten: (Cin, KH, KW)
    patches = jnp.stack(cols, axis=2)                          # (N, Cin, KH*KW, OH, OW)
    patches = patches.reshape(N, Kfeat, OH, OW)
    patches = patches.transpose(0, 2, 3, 1).reshape(M, Kfeat)  # (M, K)

    w2d = weight.reshape(Cout, Kfeat).T                        # (K, Cout)
    # bias folded into the additive term (fuses with the transpose in XLA).
    t2d = t2.transpose(0, 2, 3, 1).reshape(M, Cout) + bias.reshape(1, Cout)

    # --- pad to lane/MXU-friendly, tile-divisible shapes (zeros, sliced off) ---
    LANE = 128
    Cp = _round_up(Cout, LANE)

    Kp0 = _round_up(Kfeat, LANE)
    tk = min(tk_max, Kp0)
    Kp = _round_up(Kfeat, tk)

    Mp0 = _round_up(M, 8)
    tm = min(tm_max, Mp0)
    Mp = _round_up(M, tm)

    patches = jnp.pad(patches, ((0, Mp - M), (0, Kp - Kfeat)))
    w2d = jnp.pad(w2d, ((0, Kp - Kfeat), (0, Cp - Cout)))
    t2d = jnp.pad(t2d, ((0, Mp - M), (0, Cp - Cout)))

    # --- hot path in Pallas ---
    out2d = _pallas_conv_gemm_add(patches, w2d, t2d, tm=tm, tk=tk)

    out2d = out2d[:M, :Cout]
    return out2d.reshape(N, OH, OW, Cout).transpose(0, 3, 1, 2)  # back to NCHW


# ------------------------------------------------------------------- main ----
if __name__ == "__main__":
    # Scaled-down shapes consistent with the module's conv structure
    # (large-ish spatial, stride>1, padding, Cout>Cin). Chosen so the kernel
    # exercises multiple M tiles and the ragged-M padding path.
    N, Cin, H, W = 2, 4, 48, 48
    Cout, K, STRIDE, PAD = 8, 4, 2, 1
    OH = (H + 2 * PAD - K) // STRIDE + 1
    OW = (W + 2 * PAD - K) // STRIDE + 1

    key = jax.random.PRNGKey(0)
    k1, k2, k3, k4 = jax.random.split(key, 4)
    x1 = jax.random.normal(k1, (N, Cin, H, W), dtype=jnp.float32)
    t2 = jax.random.normal(k2, (N, Cout, OH, OW), dtype=jnp.float32)
    weight = jax.random.normal(k3, (Cout, Cin, K, K), dtype=jnp.float32) * 0.1
    bias = jax.random.normal(k4, (Cout,), dtype=jnp.float32) * 0.1

    out = model_forward(x1, t2, weight, bias, stride=STRIDE, padding=PAD)
    out = jax.block_until_ready(out)

    # Sanity check against XLA's conv (reference semantics of the PyTorch module).
    ref = jax.lax.conv_general_dilated(
        x1, weight, window_strides=(STRIDE, STRIDE),
        padding=((PAD, PAD), (PAD, PAD)),
        dimension_numbers=("NCHW", "OIHW", "NCHW"),
        precision=jax.lax.Precision.HIGHEST,
    ) + bias.reshape(1, Cout, 1, 1) + t2
    assert out.shape == (N, Cout, OH, OW)
    assert jnp.allclose(out, ref, atol=1e-3, rtol=1e-3)

    print("KERNEL_OK")
</pallas_src>

<mosaic_0001>
module attributes {stable_mosaic.version = 11 : i64} {
  func.func @conv_gemm_add_kernel(%arg0: i32, %arg1: i32, %arg2: memref<512x128xf32, #tpu.memory_space<vmem>>, %arg3: memref<128x128xf32, #tpu.memory_space<vmem>>, %arg4: memref<512x128xf32, #tpu.memory_space<vmem>>, %arg5: memref<512x128xf32, #tpu.memory_space<vmem>>, %arg6: memref<512x128xf32, #tpu.memory_space<vmem>>) attributes {dimension_semantics = [#tpu.dimension_semantics<parallel>, #tpu.dimension_semantics<arbitrary>], iteration_bounds = array<i64: 3, 1>, scalar_prefetch = 0 : i64, scratch_operands = 1 : i64, tpu.core_type = #tpu.core_type<tc>, window_params = [{transform_indices = @transform_0, window_bounds = array<i64: 512, 128>}, {transform_indices = @transform_1, window_bounds = array<i64: 128, 128>}, {transform_indices = @transform_2, window_bounds = array<i64: 512, 128>}, {transform_indices = @transform_3, window_bounds = array<i64: 512, 128>}]} {
    %c0_i32 = arith.constant 0 : i32
    %0 = arith.cmpi eq, %arg1, %c0_i32 : i32
    %1 = arith.extui %0 : i1 to i32
    %c0_i32_0 = arith.constant 0 : i32
    %2 = arith.cmpi ne, %1, %c0_i32_0 : i32
    scf.if %2 {
      %cst_10 = arith.constant 0.000000e+00 : f32
      %12 = vector.broadcast %cst_10 : f32 to vector<512x128xf32>
      %c0_11 = arith.constant 0 : index
      %c0_12 = arith.constant 0 : index
      %13 = vector.load %arg6[%c0_11, %c0_12] : memref<512x128xf32, #tpu.memory_space<vmem>>, vector<512x128xf32>
      tpu.vector_store %arg6[%c0_11, %c0_12], %12 {strides = array<i32>} : memref<512x128xf32, #tpu.memory_space<vmem>>, vector<512x128xf32>,
    } else {
    }
    %c0 = arith.constant 0 : index
    %c0_1 = arith.constant 0 : index
    %3 = vector.load %arg6[%c0, %c0_1] : memref<512x128xf32, #tpu.memory_space<vmem>>, vector<512x128xf32>
    %c0_2 = arith.constant 0 : index
    %c0_3 = arith.constant 0 : index
    %4 = vector.load %arg2[%c0_2, %c0_3] : memref<512x128xf32, #tpu.memory_space<vmem>>, vector<512x128xf32>
    %c0_4 = arith.constant 0 : index
    %c0_5 = arith.constant 0 : index
    %5 = vector.load %arg3[%c0_4, %c0_5] : memref<128x128xf32, #tpu.memory_space<vmem>>, vector<128x128xf32>
    %cst = arith.constant dense<0.000000e+00> : vector<512x128xf32>
    %6 = tpu.matmul %4, %5, %cst {dimension_numbers = #tpu.dot_dimension_numbers<[1], [0], [0], [1], [0, 0, 1, 1], [], []>} : vector<512x128xf32>, vector<128x128xf32>, vector<512x128xf32> -> vector<512x128xf32>
    %7 = arith.addf %3, %6 : vector<512x128xf32>
    %c0_6 = arith.constant 0 : index
    %c0_7 = arith.constant 0 : index
    %8 = vector.load %arg6[%c0_6, %c0_7] : memref<512x128xf32, #tpu.memory_space<vmem>>, vector<512x128xf32>
    tpu.vector_store %arg6[%c0_6, %c0_7], %7 {strides = array<i32>} : memref<512x128xf32, #tpu.memory_space<vmem>>, vector<512x128xf32>,
    %c0_i32_8 = arith.constant 0 : i32
    %9 = arith.cmpi eq, %arg1, %c0_i32_8 : i32
    %10 = arith.extui %9 : i1 to i32
    %c0_i32_9 = arith.constant 0 : i32
    %11 = arith.cmpi ne, %10, %c0_i32_9 : i32
    scf.if %11 {
      %c0_10 = arith.constant 0 : index
      %c0_11 = arith.constant 0 : index
      %12 = vector.load %arg6[%c0_10, %c0_11] : memref<512x128xf32, #tpu.memory_space<vmem>>, vector<512x128xf32>
      %c0_12 = arith.constant 0 : index
      %c0_13 = arith.constant 0 : index
      %13 = vector.load %arg4[%c0_12, %c0_13] : memref<512x128xf32, #tpu.memory_space<vmem>>, vector<512x128xf32>
      %14 = arith.addf %12, %13 : vector<512x128xf32>
      %c0_14 = arith.constant 0 : index
      %c0_15 = arith.constant 0 : index
      %15 = vector.load %arg5[%c0_14, %c0_15] : memref<512x128xf32, #tpu.memory_space<vmem>>, vector<512x128xf32>
      tpu.vector_store %arg5[%c0_14, %c0_15], %14 {strides = array<i32>} : memref<512x128xf32, #tpu.memory_space<vmem>>, vector<512x128xf32>,
    } else {
    }
    return
  }
  func.func @transform_0(%arg0: i32, %arg1: i32) -> (i32, i32) {
    %c0_i32 = arith.constant 0 : i32
    return %arg0, %arg1 : i32, i32
  }
  func.func @transform_1(%arg0: i32, %arg1: i32) -> (i32, i32) {
    %c0_i32 = arith.constant 0 : i32
    %c0_i32_0 = arith.constant 0 : i32
    return %arg1, %c0_i32 : i32, i32
  }
  func.func @transform_2(%arg0: i32, %arg1: i32) -> (i32, i32) {
    %c0_i32 = arith.constant 0 : i32
    %c0_i32_0 = arith.constant 0 : i32
    return %arg0, %c0_i32 : i32, i32
  }
  func.func @transform_3(%arg0: i32, %arg1: i32) -> (i32, i32) {
    %c0_i32 = arith.constant 0 : i32
    %c0_i32_0 = arith.constant 0 : i32
    return %arg0, %c0_i32 : i32, i32
  }
}

</mosaic_0001>

<llo_original>
// kernel: tpu_custom_call.1
$region0: #{tpu_custom_call.1}
  #allocation0 [shape = 'u32[]', space=smem, size = 0x4, offset = 0x4, fixed_abs, tag = 'smem constant byte address 0x4 - core index']
  #allocation1 [shape = 'u32[144,128]{1,0:T(1,128)}', space=vmem, size = 0x12000, scoped, tag = 'internal scratch']
  #allocation2 [shape = 'f32[512,128]{1,0:T(8,128)}', space=vmem, size = 0x40000, scoped, tag = 'scratch operand']
  %s0 = inlined_call_operand.hbm [shape: f32[1536,128], index: 0, kind: input, shape index: {}]
  %s1 = inlined_call_operand.hbm [shape: f32[128,128], index: 1, kind: input, shape index: {}]
  %s2 = inlined_call_operand.hbm [shape: f32[1536,128], index: 2, kind: input, shape index: {}]
  %s3 = inlined_call_operand.hbm [shape: f32[1536,128], index: 3, kind: output, shape index: {}]
  %s4 = sld [smem:[#allocation0]]
  $region65: #{tpu_custom_call.1} parent=0
    _
  %s6 = ssub.s32 1, %s4
  %s7 = scalar_select 0, %s6, %s4
  $region1: #{tpu_custom_call.1} parent=0
    #allocation3 [shape = 'u8[524288]{0}', space=vmem, size = 0x80000, scoped, tag = 'input window, operand 0']
    #allocation4 [shape = 's32[2]{0}', space=sflag, size = 0x8, scoped, tag = 'scoped memory for tpu_custom_call.1']
    #allocation5 [shape = 's32[2]{0}', space=sflag, size = 0x8, scoped, tag = 'scoped memory for tpu_custom_call.1']
    #allocation6 [shape = 'u8[65536]{0}', space=vmem, size = 0x10000, scoped, tag = 'input window, operand 1, single buffered']
    #allocation7 [shape = 's32[1]{0}', space=sflag, size = 0x4, scoped, tag = 'scoped memory for tpu_custom_call.1']
    #allocation8 [shape = 'u8[524288]{0}', space=vmem, size = 0x80000, scoped, tag = 'input window, operand 2']
    #allocation9 [shape = 'u8[524288]{0}', space=vmem, size = 0x80000, scoped, tag = 'output window, operand 0']
    %8 = vsyncpa [#allocation4], 0
    %s9 = scalar_lea.sflag [#allocation4], 1
    %10 = vsyncpa %s9, 0
    %11 = vsyncpa [#allocation7], 0
    %12 = vsyncpa [#allocation5], 0
    %s13 = scalar_lea.sflag [#allocation5], 1
    %14 = vsyncpa %s13, 0
    loop: start=0, step=1, limit=5
    $region2: #{tpu_custom_call.1} parent=1 // loop_pre_header
      _
    $region3: #{tpu_custom_call.1} parent=1 // loop_header
      %s16 = sphi 0, %s20
      %p17 = scmp.ge.s32.totalorder %s16, 5
      %s23 = sphi 0, %s35
      %s24 = sphi 0, %s31
      %s25 = sphi 0, %s23
      %s26 = sphi 0, %s24
      %s27 = sphi 0, %s25
      %s28 = sphi 0, %s26
      %s40 = sphi 0, %s42
      %s43 = sphi 0, %s40
      %s44 = sphi 0, %s43
      %s60 = sphi 0, %s44
      %s66 = sphi 0, %s68
      %s69 = sphi 0, %s66
      %s70 = sphi 0, %s69
      %s86 = sphi 0, %s70
      %s92 = sphi 0, %s94
      %s95 = sphi 0, %s92
      %s96 = sphi 0, %s95
      %s112 = sphi 0, %s96
      %s118 = sphi 0, %s120
      %s121 = sphi 0, %s118
      %s122 = sphi 0, %s121
      %s138 = sphi 0, %s122
    $region4: #{tpu_custom_call.1} parent=1 // loop_header_branch
      %19 = sbr.rel (%p17) target = $region8
    $region5: #{tpu_custom_call.1} parent=1 // loop_body
      %s21 = ssub.s32 %s16, 1
      %s22 = ssub.s32 %s16, 2
      %s29 = sadd.s32 1, %s24
      %p30 = scmp.ge.s32.totalorder %s29, 1
      %s31 = scalar_select %p30, 0, %s29
      %s32 = sadd.s32 1, %s23
      %s33 = scalar_select %p30, %s32, %s23
      %p34 = scmp.ge.s32.totalorder %s33, 3
      %s35 = scalar_select %p34, 0, %s33
      %s36 = ssub.s32 %s23, %s35
      %s37 = ssub.s32 %s24, %s31
      %s38 = sor.u32 %s36, %s37
      %p39 = scmp.eq.s32.totalorder %s38, 0
      %s41 = sadd.s32 %s40, 1
      %s42 = scalar_select %p39, %s40, %s41
      %p45 = pneg %p39
      %p46 = scmp.eq.s32.totalorder %s16, 2
      %p47 = por %p45, %p46
      %p48 = scmp.ne.s32.totalorder %s40, %s43
      %p49 = scmp.eq.s32.totalorder %s16, 0
      %p50 = por %p48, %p49
      %p51 = scmp.ne.s32.totalorder %s40, %s43
      %p52 = scmp.eq.s32.totalorder %s21, 2
      %p53 = por %p51, %p52
      %p54 = scmp.ne.s32.totalorder %s43, %s44
      %p55 = scmp.eq.s32.totalorder %s21, 0
      %p56 = por %p54, %p55
      %p57 = scmp.ne.s32.totalorder %s43, %s44
      %p58 = scmp.eq.s32.totalorder %s22, 2
      %p59 = por %p57, %p58
      %p61 = scmp.ne.s32.totalorder %s44, %s60
      %p62 = scmp.eq.s32.totalorder %s22, 0
      %p63 = por %p61, %p62
      %s64 = ssub.s32 %s24, %s31
      %p65 = scmp.eq.s32.totalorder %s64, 0
      %s67 = sadd.s32 %s66, 1
      %s68 = scalar_select %p65, %s66, %s67
      %p71 = pneg %p65
      %p72 = scmp.eq.s32.totalorder %s16, 2
      %p73 = por %p71, %p72
      %p74 = scmp.ne.s32.totalorder %s66, %s69
      %p75 = scmp.eq.s32.totalorder %s16, 0
      %p76 = por %p74, %p75
      %p77 = scmp.ne.s32.totalorder %s66, %s69
      %p78 = scmp.eq.s32.totalorder %s21, 2
      %p79 = por %p77, %p78
      %p80 = scmp.ne.s32.totalorder %s69, %s70
      %p81 = scmp.eq.s32.totalorder %s21, 0
      %p82 = por %p80, %p81
      %p83 = scmp.ne.s32.totalorder %s69, %s70
      %p84 = scmp.eq.s32.totalorder %s22, 2
      %p85 = por %p83, %p84
      %p87 = scmp.ne.s32.totalorder %s70, %s86
      %p88 = scmp.eq.s32.totalorder %s22, 0
      %p89 = por %p87, %p88
      %s90 = ssub.s32 %s23, %s35
      %p91 = scmp.eq.s32.totalorder %s90, 0
      %s93 = sadd.s32 %s92, 1
      %s94 = scalar_select %p91, %s92, %s93
      %p97 = pneg %p91
      %p98 = scmp.eq.s32.totalorder %s16, 2
      %p99 = por %p97, %p98
      %p100 = scmp.ne.s32.totalorder %s92, %s95
      %p101 = scmp.eq.s32.totalorder %s16, 0
      %p102 = por %p100, %p101
      %p103 = scmp.ne.s32.totalorder %s92, %s95
      %p104 = scmp.eq.s32.totalorder %s21, 2
      %p105 = por %p103, %p104
      %p106 = scmp.ne.s32.totalorder %s95, %s96
      %p107 = scmp.eq.s32.totalorder %s21, 0
      %p108 = por %p106, %p107
      %p109 = scmp.ne.s32.totalorder %s95, %s96
      %p110 = scmp.eq.s32.totalorder %s22, 2
      %p111 = por %p109, %p110
      %p113 = scmp.ne.s32.totalorder %s96, %s112
      %p114 = scmp.eq.s32.totalorder %s22, 0
      %p115 = por %p113, %p114
      %s116 = ssub.s32 %s23, %s35
      %p117 = scmp.eq.s32.totalorder %s116, 0
      %s119 = sadd.s32 %s118, 1
      %s120 = scalar_select %p117, %s118, %s119
      %p123 = pneg %p117
      %p124 = scmp.eq.s32.totalorder %s16, 2
      %p125 = por %p123, %p124
      %p126 = scmp.ne.s32.totalorder %s118, %s121
      %p127 = scmp.eq.s32.totalorder %s16, 0
      %p128 = por %p126, %p127
      %p129 = scmp.ne.s32.totalorder %s118, %s121
      %p130 = scmp.eq.s32.totalorder %s21, 2
      %p131 = por %p129, %p130
      %p132 = scmp.ne.s32.totalorder %s121, %s122
      %p133 = scmp.eq.s32.totalorder %s21, 0
      %p134 = por %p132, %p133
      %p135 = scmp.ne.s32.totalorder %s121, %s122
      %p136 = scmp.eq.s32.totalorder %s22, 2
      %p137 = por %p135, %p136
      %p139 = scmp.ne.s32.totalorder %s122, %s138
      %p140 = scmp.eq.s32.totalorder %s22, 0
      %p141 = por %p139, %p140
      %p142 = scmp.le.s32.totalorder 1, %s16
      %p143 = scmp.lt.s32.totalorder %s16, 4
      %p144 = pnand %p142, %p143
      %p145 = pneg %p144
      // Predicated region
      $region9: #{tpu_custom_call.1} parent=5 // pred_check
        _
      $region10: #{tpu_custom_call.1} parent=5 // pred_check_branch
        %147 = sbr.rel (%p144) target = $region12
      $region11: #{tpu_custom_call.1} parent=5 // pred_region
        %s148 = ssub.s32 %s16, 1
        // Predicated region
        $region13: #{tpu_custom_call.1} parent=11 // pred_check
          %p149 = pneg %p82
        $region14: #{tpu_custom_call.1} parent=11 // pred_check_branch
          %151 = sbr.rel (%p149) target = $region16
        $region15: #{tpu_custom_call.1} parent=11 // pred_region
          %s152 = smul.u32 16, %s26
          %s154 = ssub.s32 2048, 2048
          %155 = vsyncadd [#allocation7], %s154
          %s156 = smul.addr %s152, 128
          %s157 = scalar_lea.hbm %s1, %s156
          %s158 = sshll.u32 [#allocation6], 4
          %s159 = int_to_ptr.vmem [resolvable:$true] %s158
          %164 = dma.hbm_to_vmem [thread:$0]  %s157, 2048, %s159, [#allocation7], 128, 128, 8
        $region16: #{tpu_custom_call.1} parent=11 // pred_fallthru
          _
      $region12: #{tpu_custom_call.1} parent=5 // pred_fallthru
        _
      %p165 = scmp.lt.s32.totalorder %s16, 3
      // Predicated region
      $region17: #{tpu_custom_call.1} parent=5 // pred_check
        %p166 = pneg %p165
      $region18: #{tpu_custom_call.1} parent=5 // pred_check_branch
        %168 = sbr.rel (%p166) target = $region20
      $region19: #{tpu_custom_call.1} parent=5 // pred_region
        // Predicated region
        $region21: #{tpu_custom_call.1} parent=19 // pred_check
          %p169 = pneg %p50
        $region22: #{tpu_custom_call.1} parent=19 // pred_check_branch
          %171 = sbr.rel (%p169) target = $region24
        $region23: #{tpu_custom_call.1} parent=19 // pred_region
          %s172 = sand.u32 %s16, 1
          %s173 = scalar_lea.sflag [#allocation4], %s172
          %s174 = sand.u32 %s40, 1
          %s175 = smul.addr %s174, 512
          %s176 = scalar_lea.vmem [#allocation3], %s175
          %s177 = smul.u32 64, %s23
          %s179 = ssub.s32 8192, 8192
          %180 = vsyncadd %s173, %s179
          %s181 = sadd.s32 %s24, %s177
          %s182 = smul.addr %s181, 128
          %s183 = scalar_lea.hbm %s0, %s182
          %s184 = sshll.u32 %s176, 4
          %s185 = int_to_ptr.vmem [resolvable:$true] %s184
          %190 = dma.hbm_to_vmem [thread:$0]  %s183, 8192, %s185, %s173, 128, 128, 8
        $region24: #{tpu_custom_call.1} parent=19 // pred_fallthru
          _
        // Predicated region
        $region25: #{tpu_custom_call.1} parent=19 // pred_check
          %p191 = pneg %p102
        $region26: #{tpu_custom_call.1} parent=19 // pred_check_branch
          %193 = sbr.rel (%p191) target = $region28
        $region27: #{tpu_custom_call.1} parent=19 // pred_region
          %s194 = sand.u32 %s16, 1
          %s195 = scalar_lea.sflag [#allocation4], %s194
          %s196 = sand.u32 %s92, 1
          %s197 = smul.addr %s196, 512
          %s198 = scalar_lea.vmem [#allocation8], %s197
          %s199 = smul.u32 64, %s23
          %s201 = ssub.s32 8192, 8192
          %202 = vsyncadd %s195, %s201
          %s203 = smul.addr %s199, 128
          %s204 = scalar_lea.hbm %s2, %s203
          %s205 = sshll.u32 %s198, 4
          %s206 = int_to_ptr.vmem [resolvable:$true] %s205
          %211 = dma.hbm_to_vmem [thread:$0]  %s204, 8192, %s206, %s195, 128, 128, 8
        $region28: #{tpu_custom_call.1} parent=19 // pred_fallthru
          _
      $region20: #{tpu_custom_call.1} parent=5 // pred_fallthru
        _
      %p212 = scmp.le.s32.totalorder 1, %s16
      %p213 = scmp.lt.s32.totalorder %s16, 4
      %p214 = pnand %p212, %p213
      %p215 = pneg %p214
      // Predicated region
      $region29: #{tpu_custom_call.1} parent=5 // pred_check
        _
      $region30: #{tpu_custom_call.1} parent=5 // pred_check_branch
        %217 = sbr.rel (%p214) target = $region32
      $region31: #{tpu_custom_call.1} parent=5 // pred_region
        %s218 = ssub.s32 %s16, 1
        %s219 = sand.u32 %s21, 1
        %s220 = scalar_lea.sflag [#allocation4], %s219
        %s221 = sand.u32 %s43, 1
        %s222 = smul.addr %s221, 512
        %s223 = scalar_lea.vmem [#allocation3], %s222
        // Predicated region
        $region33: #{tpu_custom_call.1} parent=31 // pred_check
          %p224 = pneg %p56
        $region34: #{tpu_custom_call.1} parent=31 // pred_check_branch
          %226 = sbr.rel (%p224) target = $region36
        $region35: #{tpu_custom_call.1} parent=31 // pred_region
          %227 = dma.done %s220, 8192
        $region36: #{tpu_custom_call.1} parent=31 // pred_fallthru
          _
        // Predicated region
        $region37: #{tpu_custom_call.1} parent=31 // pred_check
          %p228 = pneg %p82
        $region38: #{tpu_custom_call.1} parent=31 // pred_check_branch
          %230 = sbr.rel (%p228) target = $region40
        $region39: #{tpu_custom_call.1} parent=31 // pred_region
          %231 = dma.done [#allocation7], 2048
        $region40: #{tpu_custom_call.1} parent=31 // pred_fallthru
          _
        %s232 = sand.u32 %s21, 1
        %s233 = scalar_lea.sflag [#allocation4], %s232
        %s234 = sand.u32 %s95, 1
        %s235 = smul.addr %s234, 512
        %s236 = scalar_lea.vmem [#allocation8], %s235
        // Predicated region
        $region41: #{tpu_custom_call.1} parent=31 // pred_check
          %p237 = pneg %p108
        $region42: #{tpu_custom_call.1} parent=31 // pred_check_branch
          %239 = sbr.rel (%p237) target = $region44
        $region43: #{tpu_custom_call.1} parent=31 // pred_region
          %240 = dma.done %s233, 8192
        $region44: #{tpu_custom_call.1} parent=31 // pred_fallthru
          _
        %s241 = sand.u32 %s21, 1
        %s242 = scalar_lea.sflag [#allocation4], %s241
        %s243 = sand.u32 %s43, 1
        %s244 = smul.addr %s243, 512
        %s245 = scalar_lea.vmem [#allocation3], %s244
        %p246 = pneg %p56
        %p247 = pneg %p53
        %p248 = pneg %p82
        %p249 = pneg %p79
        %s250 = sand.u32 %s21, 1
        %s251 = scalar_lea.sflag [#allocation4], %s250
        %s252 = sand.u32 %s95, 1
        %s253 = smul.addr %s252, 512
        %s254 = scalar_lea.vmem [#allocation8], %s253
        %p255 = pneg %p108
        %p256 = pneg %p105
        %p257 = pneg %p134
        %p258 = pneg %p131
        %s259 = sand.u32 %s121, 1
        %s260 = scalar_lea.sflag [#allocation5], %s259
        %s261 = sand.u32 %s121, 1
        %s262 = smul.addr %s261, 512
        %s263 = scalar_lea.vmem [#allocation9], %s262
        %s264 = smul.u32 64, %s25
        %s265 = smul.u32 16, %s26
        %s266 = smul.u32 64, %s25
        %s267 = smul.u32 64, %s25
        %p268 = scmp.eq.s32.totalorder %s26, 0
        // Predicated region
        $region45: #{tpu_custom_call.1} parent=31 // pred_check
          %p269 = pneg %p268
        $region46: #{tpu_custom_call.1} parent=31 // pred_check_branch
          %271 = sbr.rel (%p269) target = $region48
        $region47: #{tpu_custom_call.1} parent=31 // pred_region
          %272 = vst [vmem:[#allocation2] sm:$0xff] 0.0
          %273 = vst [vmem:[#allocation2 + $0x8] sm:$0xff] 0.0
          %274 = vst [vmem:[#allocation2 + $0x10] sm:$0xff] 0.0
          %275 = vst [vmem:[#allocation2 + $0x18] sm:$0xff] 0.0
          %276 = vst [vmem:[#allocation2 + $0x20] sm:$0xff] 0.0
          %277 = vst [vmem:[#allocation2 + $0x28] sm:$0xff] 0.0
          %278 = vst [vmem:[#allocation2 + $0x30] sm:$0xff] 0.0
          %279 = vst [vmem:[#allocation2 + $0x38] sm:$0xff] 0.0
          %280 = vst [vmem:[#allocation2 + $0x40] sm:$0xff] 0.0
          %281 = vst [vmem:[#allocation2 + $0x48] sm:$0xff] 0.0
          %282 = vst [vmem:[#allocation2 + $0x50] sm:$0xff] 0.0
          %283 = vst [vmem:[#allocation2 + $0x58] sm:$0xff] 0.0
          %284 = vst [vmem:[#allocation2 + $0x60] sm:$0xff] 0.0
          %285 = vst [vmem:[#allocation2 + $0x68] sm:$0xff] 0.0
          %286 = vst [vmem:[#allocation2 + $0x70] sm:$0xff] 0.0
          %287 = vst [vmem:[#allocation2 + $0x78] sm:$0xff] 0.0
          %288 = vst [vmem:[#allocation2 + $0x80] sm:$0xff] 0.0
          %289 = vst [vmem:[#allocation2 + $0x88] sm:$0xff] 0.0
          %290 = vst [vmem:[#allocation2 + $0x90] sm:$0xff] 0.0
          %291 = vst [vmem:[#allocation2 + $0x98] sm:$0xff] 0.0
          %292 = vst [vmem:[#allocation2 + $0xa0] sm:$0xff] 0.0
          %293 = vst [vmem:[#allocation2 + $0xa8] sm:$0xff] 0.0
          %294 = vst [vmem:[#allocation2 + $0xb0] sm:$0xff] 0.0
          %295 = vst [vmem:[#allocation2 + $0xb8] sm:$0xff] 0.0
          %296 = vst [vmem:[#allocation2 + $0xc0] sm:$0xff] 0.0
          %297 = vst [vmem:[#allocation2 + $0xc8] sm:$0xff] 0.0
          %298 = vst [vmem:[#allocation2 + $0xd0] sm:$0xff] 0.0
          %299 = vst [vmem:[#allocation2 + $0xd8] sm:$0xff] 0.0
          %300 = vst [vmem:[#allocation2 + $0xe0] sm:$0xff] 0.0
          %301 = vst [vmem:[#allocation2 + $0xe8] sm:$0xff] 0.0
          %302 = vst [vmem:[#allocation2 + $0xf0] sm:$0xff] 0.0
          %303 = vst [vmem:[#allocation2 + $0xf8] sm:$0xff] 0.0
          %304 = vst [vmem:[#allocation2 + $0x100] sm:$0xff] 0.0
          %305 = vst [vmem:[#allocation2 + $0x108] sm:$0xff] 0.0
          %306 = vst [vmem:[#allocation2 + $0x110] sm:$0xff] 0.0
          %307 = vst [vmem:[#allocation2 + $0x118] sm:$0xff] 0.0
          %308 = vst [vmem:[#allocation2 + $0x120] sm:$0xff] 0.0
          %309 = vst [vmem:[#allocation2 + $0x128] sm:$0xff] 0.0
          %310 = vst [vmem:[#allocation2 + $0x130] sm:$0xff] 0.0
          %311 = vst [vmem:[#allocation2 + $0x138] sm:$0xff] 0.0
          %312 = vst [vmem:[#allocation2 + $0x140] sm:$0xff] 0.0
          %313 = vst [vmem:[#allocation2 + $0x148] sm:$0xff] 0.0
          %314 = vst [vmem:[#allocation2 + $0x150] sm:$0xff] 0.0
          %315 = vst [vmem:[#allocation2 + $0x158] sm:$0xff] 0.0
          %316 = vst [vmem:[#allocation2 + $0x160] sm:$0xff] 0.0
          %317 = vst [vmem:[#allocation2 + $0x168] sm:$0xff] 0.0
          %318 = vst [vmem:[#allocation2 + $0x170] sm:$0xff] 0.0
          %319 = vst [vmem:[#allocation2 + $0x178] sm:$0xff] 0.0
          %320 = vst [vmem:[#allocation2 + $0x180] sm:$0xff] 0.0
          %321 = vst [vmem:[#allocation2 + $0x188] sm:$0xff] 0.0
          %322 = vst [vmem:[#allocation2 + $0x190] sm:$0xff] 0.0
          %323 = vst [vmem:[#allocation2 + $0x198] sm:$0xff] 0.0
          %324 = vst [vmem:[#allocation2 + $0x1a0] sm:$0xff] 0.0
          %325 = vst [vmem:[#allocation2 + $0x1a8] sm:$0xff] 0.0
          %326 = vst [vmem:[#allocation2 + $0x1b0] sm:$0xff] 0.0
          %327 = vst [vmem:[#allocation2 + $0x1b8] sm:$0xff] 0.0
          %328 = vst [vmem:[#allocation2 + $0x1c0] sm:$0xff] 0.0
          %329 = vst [vmem:[#allocation2 + $0x1c8] sm:$0xff] 0.0
          %330 = vst [vmem:[#allocation2 + $0x1d0] sm:$0xff] 0.0
          %331 = vst [vmem:[#allocation2 + $0x1d8] sm:$0xff] 0.0
          %332 = vst [vmem:[#allocation2 + $0x1e0] sm:$0xff] 0.0
          %333 = vst [vmem:[#allocation2 + $0x1e8] sm:$0xff] 0.0
          %334 = vst [vmem:[#allocation2 + $0x1f0] sm:$0xff] 0.0
          %335 = vst [vmem:[#allocation2 + $0x1f8] sm:$0xff] 0.0
        $region48: #{tpu_custom_call.1} parent=31 // pred_fallthru
          _
        %v336 = vld [vmem:[#allocation2] sm:$0xff]
        %v337 = vld [vmem:[#allocation2 + $0x8] sm:$0xff]
        %v338 = vld [vmem:[#allocation2 + $0x10] sm:$0xff]
        %v339 = vld [vmem:[#allocation2 + $0x18] sm:$0xff]
        %v340 = vld [vmem:[#allocation2 + $0x20] sm:$0xff]
        %v341 = vld [vmem:[#allocation2 + $0x28] sm:$0xff]
        %v342 = vld [vmem:[#allocation2 + $0x30] sm:$0xff]
        %v343 = vld [vmem:[#allocation2 + $0x38] sm:$0xff]
        %v344 = vld [vmem:[#allocation2 + $0x40] sm:$0xff]
        %v345 = vld [vmem:[#allocation2 + $0x48] sm:$0xff]
        %v346 = vld [vmem:[#allocation2 + $0x50] sm:$0xff]
        %v347 = vld [vmem:[#allocation2 + $0x58] sm:$0xff]
        %v348 = vld [vmem:[#allocation2 + $0x60] sm:$0xff]
        %v349 = vld [vmem:[#allocation2 + $0x68] sm:$0xff]
        %v350 = vld [vmem:[#allocation2 + $0x70] sm:$0xff]
        %v351 = vld [vmem:[#allocation2 + $0x78] sm:$0xff]
        %v352 = vld [vmem:[#allocation2 + $0x80] sm:$0xff]
        %v353 = vld [vmem:[#allocation2 + $0x88] sm:$0xff]
        %v354 = vld [vmem:[#allocation2 + $0x90] sm:$0xff]
        %v355 = vld [vmem:[#allocation2 + $0x98] sm:$0xff]
        %v356 = vld [vmem:[#allocation2 + $0xa0] sm:$0xff]
        %v357 = vld [vmem:[#allocation2 + $0xa8] sm:$0xff]
        %v358 = vld [vmem:[#allocation2 + $0xb0] sm:$0xff]
        %v359 = vld [vmem:[#allocation2 + $0xb8] sm:$0xff]
        %v360 = vld [vmem:[#allocation2 + $0xc0] sm:$0xff]
        %v361 = vld [vmem:[#allocation2 + $0xc8] sm:$0xff]
        %v362 = vld [vmem:[#allocation2 + $0xd0] sm:$0xff]
        %v363 = vld [vmem:[#allocation2 + $0xd8] sm:$0xff]
        %v364 = vld [vmem:[#allocation2 + $0xe0] sm:$0xff]
        %v365 = vld [vmem:[#allocation2 + $0xe8] sm:$0xff]
        %v366 = vld [vmem:[#allocation2 + $0xf0] sm:$0xff]
        %v367 = vld [vmem:[#allocation2 + $0xf8] sm:$0xff]
        %v368 = vld [vmem:[#allocation2 + $0x100] sm:$0xff]
        %v369 = vld [vmem:[#allocation2 + $0x108] sm:$0xff]
        %v370 = vld [vmem:[#allocation2 + $0x110] sm:$0xff]
        %v371 = vld [vmem:[#allocation2 + $0x118] sm:$0xff]
        %v372 = vld [vmem:[#allocation2 + $0x120] sm:$0xff]
        %v373 = vld [vmem:[#allocation2 + $0x128] sm:$0xff]
        %v374 = vld [vmem:[#allocation2 + $0x130] sm:$0xff]
        %v375 = vld [vmem:[#allocation2 + $0x138] sm:$0xff]
        %v376 = vld [vmem:[#allocation2 + $0x140] sm:$0xff]
        %v377 = vld [vmem:[#allocation2 + $0x148] sm:$0xff]
        %v378 = vld [vmem:[#allocation2 + $0x150] sm:$0xff]
        %v379 = vld [vmem:[#allocation2 + $0x158] sm:$0xff]
        %v380 = vld [vmem:[#allocation2 + $0x160] sm:$0xff]
        %v381 = vld [vmem:[#allocation2 + $0x168] sm:$0xff]
        %v382 = vld [vmem:[#allocation2 + $0x170] sm:$0xff]
        %v383 = vld [vmem:[#allocation2 + $0x178] sm:$0xff]
        %v384 = vld [vmem:[#allocation2 + $0x180] sm:$0xff]
        %v385 = vld [vmem:[#allocation2 + $0x188] sm:$0xff]
        %v386 = vld [vmem:[#allocation2 + $0x190] sm:$0xff]
        %v387 = vld [vmem:[#allocation2 + $0x198] sm:$0xff]
        %v388 = vld [vmem:[#allocation2 + $0x1a0] sm:$0xff]
        %v389 = vld [vmem:[#allocation2 + $0x1a8] sm:$0xff]
        %v390 = vld [vmem:[#allocation2 + $0x1b0] sm:$0xff]
        %v391 = vld [vmem:[#allocation2 + $0x1b8] sm:$0xff]
        %v392 = vld [vmem:[#allocation2 + $0x1c0] sm:$0xff]
        %v393 = vld [vmem:[#allocation2 + $0x1c8] sm:$0xff]
        %v394 = vld [vmem:[#allocation2 + $0x1d0] sm:$0xff]
        %v395 = vld [vmem:[#allocation2 + $0x1d8] sm:$0xff]
        %v396 = vld [vmem:[#allocation2 + $0x1e0] sm:$0xff]
        %v397 = vld [vmem:[#allocation2 + $0x1e8] sm:$0xff]
        %v398 = vld [vmem:[#allocation2 + $0x1f0] sm:$0xff]
        %v399 = vld [vmem:[#allocation2 + $0x1f8] sm:$0xff]
        %v400 = vld [vmem:[%s223] sm:$0xff]
        %v401 = vld [vmem:[%s223 + $0x8] sm:$0xff]
        %v402 = vld [vmem:[%s223 + $0x10] sm:$0xff]
        %v403 = vld [vmem:[%s223 + $0x18] sm:$0xff]
        %v404 = vld [vmem:[%s223 + $0x20] sm:$0xff]
        %v405 = vld [vmem:[%s223 + $0x28] sm:$0xff]
        %v406 = vld [vmem:[%s223 + $0x30] sm:$0xff]
        %v407 = vld [vmem:[%s223 + $0x38] sm:$0xff]
        %v408 = vld [vmem:[%s223 + $0x40] sm:$0xff]
        %v409 = vld [vmem:[%s223 + $0x48] sm:$0xff]
        %v410 = vld [vmem:[%s223 + $0x50] sm:$0xff]
        %v411 = vld [vmem:[%s223 + $0x58] sm:$0xff]
        %v412 = vld [vmem:[%s223 + $0x60] sm:$0xff]
        %v413 = vld [vmem:[%s223 + $0x68] sm:$0xff]
        %v414 = vld [vmem:[%s223 + $0x70] sm:$0xff]
        %v415 = vld [vmem:[%s223 + $0x78] sm:$0xff]
        %v416 = vld [vmem:[%s223 + $0x80] sm:$0xff]
        %v417 = vld [vmem:[%s223 + $0x88] sm:$0xff]
        %v418 = vld [vmem:[%s223 + $0x90] sm:$0xff]
        %v419 = vld [vmem:[%s223 + $0x98] sm:$0xff]
        %v420 = vld [vmem:[%s223 + $0xa0] sm:$0xff]
        %v421 = vld [vmem:[%s223 + $0xa8] sm:$0xff]
        %v422 = vld [vmem:[%s223 + $0xb0] sm:$0xff]
        %v423 = vld [vmem:[%s223 + $0xb8] sm:$0xff]
        %v424 = vld [vmem:[%s223 + $0xc0] sm:$0xff]
        %v425 = vld [vmem:[%s223 + $0xc8] sm:$0xff]
        %v426 = vld [vmem:[%s223 + $0xd0] sm:$0xff]
        %v427 = vld [vmem:[%s223 + $0xd8] sm:$0xff]
        %v428 = vld [vmem:[%s223 + $0xe0] sm:$0xff]
        %v429 = vld [vmem:[%s223 + $0xe8] sm:$0xff]
        %v430 = vld [vmem:[%s223 + $0xf0] sm:$0xff]
        %v431 = vld [vmem:[%s223 + $0xf8] sm:$0xff]
        %v432 = vld [vmem:[%s223 + $0x100] sm:$0xff]
        %v433 = vld [vmem:[%s223 + $0x108] sm:$0xff]
        %v434 = vld [vmem:[%s223 + $0x110] sm:$0xff]
        %v435 = vld [vmem:[%s223 + $0x118] sm:$0xff]
        %v436 = vld [vmem:[%s223 + $0x120] sm:$0xff]
        %v437 = vld [vmem:[%s223 + $0x128] sm:$0xff]
        %v438 = vld [vmem:[%s223 + $0x130] sm:$0xff]
        %v439 = vld [vmem:[%s223 + $0x138] sm:$0xff]
        %v440 = vld [vmem:[%s223 + $0x140] sm:$0xff]
        %v441 = vld [vmem:[%s223 + $0x148] sm:$0xff]
        %v442 = vld [vmem:[%s223 + $0x150] sm:$0xff]
        %v443 = vld [vmem:[%s223 + $0x158] sm:$0xff]
        %v444 = vld [vmem:[%s223 + $0x160] sm:$0xff]
        %v445 = vld [vmem:[%s223 + $0x168] sm:$0xff]
        %v446 = vld [vmem:[%s223 + $0x170] sm:$0xff]
        %v447 = vld [vmem:[%s223 + $0x178] sm:$0xff]
        %v448 = vld [vmem:[%s223 + $0x180] sm:$0xff]
        %v449 = vld [vmem:[%s223 + $0x188] sm:$0xff]
        %v450 = vld [vmem:[%s223 + $0x190] sm:$0xff]
        %v451 = vld [vmem:[%s223 + $0x198] sm:$0xff]
        %v452 = vld [vmem:[%s223 + $0x1a0] sm:$0xff]
        %v453 = vld [vmem:[%s223 + $0x1a8] sm:$0xff]
        %v454 = vld [vmem:[%s223 + $0x1b0] sm:$0xff]
        %v455 = vld [vmem:[%s223 + $0x1b8] sm:$0xff]
        %v456 = vld [vmem:[%s223 + $0x1c0] sm:$0xff]
        %v457 = vld [vmem:[%s223 + $0x1c8] sm:$0xff]
        %v458 = vld [vmem:[%s223 + $0x1d0] sm:$0xff]
        %v459 = vld [vmem:[%s223 + $0x1d8] sm:$0xff]
        %v460 = vld [vmem:[%s223 + $0x1e0] sm:$0xff]
        %v461 = vld [vmem:[%s223 + $0x1e8] sm:$0xff]
        %v462 = vld [vmem:[%s223 + $0x1f0] sm:$0xff]
        %v463 = vld [vmem:[%s223 + $0x1f8] sm:$0xff]
        %v464 = vld [vmem:[#allocation6] sm:$0xff]
        %v465 = vld [vmem:[#allocation6 + $0x8] sm:$0xff]
        %v466 = vld [vmem:[#allocation6 + $0x10] sm:$0xff]
        %v467 = vld [vmem:[#allocation6 + $0x18] sm:$0xff]
        %v468 = vld [vmem:[#allocation6 + $0x20] sm:$0xff]
        %v469 = vld [vmem:[#allocation6 + $0x28] sm:$0xff]
        %v470 = vld [vmem:[#allocation6 + $0x30] sm:$0xff]
        %v471 = vld [vmem:[#allocation6 + $0x38] sm:$0xff]
        %v472 = vld [vmem:[#allocation6 + $0x40] sm:$0xff]
        %v473 = vld [vmem:[#allocation6 + $0x48] sm:$0xff]
        %v474 = vld [vmem:[#allocation6 + $0x50] sm:$0xff]
        %v475 = vld [vmem:[#allocation6 + $0x58] sm:$0xff]
        %v476 = vld [vmem:[#allocation6 + $0x60] sm:$0xff]
        %v477 = vld [vmem:[#allocation6 + $0x68] sm:$0xff]
        %v478 = vld [vmem:[#allocation6 + $0x70] sm:$0xff]
        %v479 = vld [vmem:[#allocation6 + $0x78] sm:$0xff]
        %480 = vmatprep.subr.mxu0 0.0
        %481 = vmatpush1.msra.mxu0 %v464
        %482 = vmatprep.subr.mxu0 0.0
        %483 = vmatpush1.msra.mxu0 %v465
        %484 = vmatprep.subr.mxu0 0.0
        %485 = vmatpush1.msra.mxu0 %v466
        %486 = vmatprep.subr.mxu0 0.0
        %487 = vmatpush1.msra.mxu0 %v467
        %488 = vmatprep.subr.mxu0 0.0
        %489 = vmatpush1.msra.mxu0 %v468
        %490 = vmatprep.subr.mxu0 0.0
        %491 = vmatpush1.msra.mxu0 %v469
        %492 = vmatprep.subr.mxu0 0.0
        %493 = vmatpush1.msra.mxu0 %v470
        %494 = vmatprep.subr.mxu0 0.0
        %495 = vmatpush1.msra.mxu0 %v471
        %496 = vmatprep.subr.mxu0 0.0
        %497 = vmatpush1.msra.mxu0 %v472
        %498 = vmatprep.subr.mxu0 0.0
        %499 = vmatpush1.msra.mxu0 %v473
        %500 = vmatprep.subr.mxu0 0.0
        %501 = vmatpush1.msra.mxu0 %v474
        %502 = vmatprep.subr.mxu0 0.0
        %503 = vmatpush1.msra.mxu0 %v475
        %504 = vmatprep.subr.mxu0 0.0
        %505 = vmatpush1.msra.mxu0 %v476
        %506 = vmatprep.subr.mxu0 0.0
        %507 = vmatpush1.msra.mxu0 %v477
        %508 = vmatprep.subr.mxu0 0.0
        %509 = vmatpush1.msra.mxu0 %v478
        %510 = vmatprep.subr.mxu0 0.0
        %511 = vmatpush1.msra.mxu0 %v479
        %512 = vmatprep.subr.mxu0 0.0
        %513 = vmatpush1.msra.mxu0 0.0
        %514 = vmatprep.subr.mxu0 0.0
        %515 = vmatpush1.msra.mxu0 0.0
        %516 = vmatprep.subr.mxu0 0.0
        %517 = vmatpush1.msra.mxu0 0.0
        %518 = vmatprep.subr.mxu0 0.0
        %519 = vmatpush1.msra.mxu0 0.0
        %520 = vmatprep.subr.mxu0 0.0
        %521 = vmatpush1.msra.mxu0 0.0
        %522 = vmatprep.subr.mxu0 0.0
        %523 = vmatpush1.msra.mxu0 0.0
        %524 = vmatprep.subr.mxu0 0.0
        %525 = vmatpush1.msra.mxu0 0.0
        %526 = vmatprep.subr.mxu0 0.0
        %527 = vmatpush1.msra.mxu0 0.0
        %528 = vmatprep.subr.mxu0 0.0
        %529 = vmatpush1.msra.mxu0 0.0
        %530 = vmatprep.subr.mxu0 0.0
        %531 = vmatpush1.msra.mxu0 0.0
        %532 = vmatprep.subr.mxu0 0.0
        %533 = vmatpush1.msra.mxu0 0.0
        %534 = vmatprep.subr.mxu0 0.0
        %535 = vmatpush1.msra.mxu0 0.0
        %536 = vmatprep.subr.mxu0 0.0
        %537 = vmatpush1.msra.mxu0 0.0
        %538 = vmatprep.subr.mxu0 0.0
        %539 = vmatpush1.msra.mxu0 0.0
        %540 = vmatprep.subr.mxu0 0.0
        %541 = vmatpush1.msra.mxu0 0.0
        %542 = vmatprep.subr.mxu0 0.0
        %543 = vmatpush1.msra.mxu0 0.0
        %544 = vmatprep.mubr.f32.mxu0 0.0
        %545 = vmatmul.mubr.f32.gmra.mrb[0].mxu0 %v400
        %v546 = vpop.f32.mrb[0].mxu0
        %v547 = vadd.f32 0.0, %v546
        %v548 = vpop.f32.mrb[0].mxu0
        %549 = vmatprep.mubr.f32.mxu0 0.0
        %550 = vmatmul.mubr.f32.gmra.mrb[0].mxu0 %v401
        %v551 = vpop.f32.mrb[0].mxu0
        %v552 = vadd.f32 0.0, %v551
        %v553 = vpop.f32.mrb[0].mxu0
        %554 = vmatprep.mubr.f32.mxu0 0.0
        %555 = vmatmul.mubr.f32.gmra.mrb[0].mxu0 %v402
        %v556 = vpop.f32.mrb[0].mxu0
        %v557 = vadd.f32 0.0, %v556
        %v558 = vpop.f32.mrb[0].mxu0
        %559 = vmatprep.mubr.f32.mxu0 0.0
        %560 = vmatmul.mubr.f32.gmra.mrb[0].mxu0 %v403
        %v561 = vpop.f32.mrb[0].mxu0
        %v562 = vadd.f32 0.0, %v561
        %v563 = vpop.f32.mrb[0].mxu0
        %564 = vmatprep.mubr.f32.mxu0 0.0
        %565 = vmatmul.mubr.f32.gmra.mrb[0].mxu0 %v404
        %v566 = vpop.f32.mrb[0].mxu0
        %v567 = vadd.f32 0.0, %v566
        %v568 = vpop.f32.mrb[0].mxu0
        %569 = vmatprep.mubr.f32.mxu0 0.0
        %570 = vmatmul.mubr.f32.gmra.mrb[0].mxu0 %v405
        %v571 = vpop.f32.mrb[0].mxu0
        %v572 = vadd.f32 0.0, %v571
        %v573 = vpop.f32.mrb[0].mxu0
        %574 = vmatprep.mubr.f32.mxu0 0.0
        %575 = vmatmul.mubr.f32.gmra.mrb[0].mxu0 %v406
        %v576 = vpop.f32.mrb[0].mxu0
        %v577 = vadd.f32 0.0, %v576
        %v578 = vpop.f32.mrb[0].mxu0
        %579 = vmatprep.mubr.f32.mxu0 0.0
        %580 = vmatmul.mubr.f32.gmra.mrb[0].mxu0 %v407
        %v581 = vpop.f32.mrb[0].mxu0
        %v582 = vadd.f32 0.0, %v581
        %v583 = vpop.f32.mrb[0].mxu0
        %584 = vmatprep.mubr.f32.mxu0 0.0
        %585 = vmatmul.mubr.f32.gmra.mrb[0].mxu0 %v408
        %v586 = vpop.f32.mrb[0].mxu0
        %v587 = vadd.f32 0.0, %v586
        %v588 = vpop.f32.mrb[0].mxu0
        %589 = vmatprep.mubr.f32.mxu0 0.0
        %590 = vmatmul.mubr.f32.gmra.mrb[0].mxu0 %v409
        %v591 = vpop.f32.mrb[0].mxu0
        %v592 = vadd.f32 0.0, %v591
        %v593 = vpop.f32.mrb[0].mxu0
        %594 = vmatprep.mubr.f32.mxu0 0.0
        %595 = vmatmul.mubr.f32.gmra.mrb[0].mxu0 %v410
        %v596 = vpop.f32.mrb[0].mxu0
        %v597 = vadd.f32 0.0, %v596
        %v598 = vpop.f32.mrb[0].mxu0
        %599 = vmatprep.mubr.f32.mxu0 0.0
        %600 = vmatmul.mubr.f32.gmra.mrb[0].mxu0 %v411
        %v601 = vpop.f32.mrb[0].mxu0
        %v602 = vadd.f32 0.0, %v601
        %v603 = vpop.f32.mrb[0].mxu0
        %604 = vmatprep.mubr.f32.mxu0 0.0
        %605 = vmatmul.mubr.f32.gmra.mrb[0].mxu0 %v412
        %v606 = vpop.f32.mrb[0].mxu0
        %v607 = vadd.f32 0.0, %v606
        %v608 = vpop.f32.mrb[0].mxu0
        %609 = vmatprep.mubr.f32.mxu0 0.0
        %610 = vmatmul.mubr.f32.gmra.mrb[0].mxu0 %v413
        %v611 = vpop.f32.mrb[0].mxu0
        %v612 = vadd.f32 0.0, %v611
        %v613 = vpop.f32.mrb[0].mxu0
        %614 = vmatprep.mubr.f32.mxu0 0.0
        %615 = vmatmul.mubr.f32.gmra.mrb[0].mxu0 %v414
        %v616 = vpop.f32.mrb[0].mxu0
        %v617 = vadd.f32 0.0, %v616
        %v618 = vpop.f32.mrb[0].mxu0
        %619 = vmatprep.mubr.f32.mxu0 0.0
        %620 = vmatmul.mubr.f32.gmra.mrb[0].mxu0 %v415
        %v621 = vpop.f32.mrb[0].mxu0
        %v622 = vadd.f32 0.0, %v621
        %v623 = vpop.f32.mrb[0].mxu0
        %624 = vmatprep.mubr.f32.mxu0 0.0
        %625 = vmatmul.mubr.f32.gmra.mrb[0].mxu0 %v416
        %v626 = vpop.f32.mrb[0].mxu0
        %v627 = vadd.f32 0.0, %v626
        %v628 = vpop.f32.mrb[0].mxu0
        %629 = vmatprep.mubr.f32.mxu0 0.0
        %630 = vmatmul.mubr.f32.gmra.mrb[0].mxu0 %v417
        %v631 = vpop.f32.mrb[0].mxu0
        %v632 = vadd.f32 0.0, %v631
        %v633 = vpop.f32.mrb[0].mxu0
        %634 = vmatprep.mubr.f32.mxu0 0.0
        %635 = vmatmul.mubr.f32.gmra.mrb[0].mxu0 %v418
        %v636 = vpop.f32.mrb[0].mxu0
        %v637 = vadd.f32 0.0, %v636
        %v638 = vpop.f32.mrb[0].mxu0
        %639 = vmatprep.mubr.f32.mxu0 0.0
        %640 = vmatmul.mubr.f32.gmra.mrb[0].mxu0 %v419
        %v641 = vpop.f32.mrb[0].mxu0
        %v642 = vadd.f32 0.0, %v641
        %v643 = vpop.f32.mrb[0].mxu0
        %644 = vmatprep.mubr.f32.mxu0 0.0
        %645 = vmatmul.mubr.f32.gmra.mrb[0].mxu0 %v420
        %v646 = vpop.f32.mrb[0].mxu0
        %v647 = vadd.f32 0.0, %v646
        %v648 = vpop.f32.mrb[0].mxu0
        %649 = vmatprep.mubr.f32.mxu0 0.0
        %650 = vmatmul.mubr.f32.gmra.mrb[0].mxu0 %v421
        %v651 = vpop.f32.mrb[0].mxu0
        %v652 = vadd.f32 0.0, %v651
        %v653 = vpop.f32.mrb[0].mxu0
        %654 = vmatprep.mubr.f32.mxu0 0.0
        %655 = vmatmul.mubr.f32.gmra.mrb[0].mxu0 %v422
        %v656 = vpop.f32.mrb[0].mxu0
        %v657 = vadd.f32 0.0, %v656
        %v658 = vpop.f32.mrb[0].mxu0
        %659 = vmatprep.mubr.f32.mxu0 0.0
        %660 = vmatmul.mubr.f32.gmra.mrb[0].mxu0 %v423
        %v661 = vpop.f32.mrb[0].mxu0
        %v662 = vadd.f32 0.0, %v661
        %v663 = vpop.f32.mrb[0].mxu0
        %664 = vmatprep.mubr.f32.mxu0 0.0
        %665 = vmatmul.mubr.f32.gmra.mrb[0].mxu0 %v424
        %v666 = vpop.f32.mrb[0].mxu0
        %v667 = vadd.f32 0.0, %v666
        %v668 = vpop.f32.mrb[0].mxu0
        %669 = vmatprep.mubr.f32.mxu0 0.0
        %670 = vmatmul.mubr.f32.gmra.mrb[0].mxu0 %v425
        %v671 = vpop.f32.mrb[0].mxu0
        %v672 = vadd.f32 0.0, %v671
        %v673 = vpop.f32.mrb[0].mxu0
        %674 = vmatprep.mubr.f32.mxu0 0.0
        %675 = vmatmul.mubr.f32.gmra.mrb[0].mxu0 %v426
        %v676 = vpop.f32.mrb[0].mxu0
        %v677 = vadd.f32 0.0, %v676
        %v678 = vpop.f32.mrb[0].mxu0
        %679 = vmatprep.mubr.f32.mxu0 0.0
        %680 = vmatmul.mubr.f32.gmra.mrb[0].mxu0 %v427
        %v681 = vpop.f32.mrb[0].mxu0
        %v682 = vadd.f32 0.0, %v681
        %v683 = vpop.f32.mrb[0].mxu0
        %684 = vmatprep.mubr.f32.mxu0 0.0
        %685 = vmatmul.mubr.f32.gmra.mrb[0].mxu0 %v428
        %v686 = vpop.f32.mrb[0].mxu0
        %v687 = vadd.f32 0.0, %v686
        %v688 = vpop.f32.mrb[0].mxu0
        %689 = vmatprep.mubr.f32.mxu0 0.0
        %690 = vmatmul.mubr.f32.gmra.mrb[0].mxu0 %v429
        %v691 = vpop.f32.mrb[0].mxu0
        %v692 = vadd.f32 0.0, %v691
        %v693 = vpop.f32.mrb[0].mxu0
        %694 = vmatprep.mubr.f32.mxu0 0.0
        %695 = vmatmul.mubr.f32.gmra.mrb[0].mxu0 %v430
        %v696 = vpop.f32.mrb[0].mxu0
        %v697 = vadd.f32 0.0, %v696
        %v698 = vpop.f32.mrb[0].mxu0
        %699 = vmatprep.mubr.f32.mxu0 0.0
        %700 = vmatmul.mubr.f32.gmra.mrb[0].mxu0 %v431
        %v701 = vpop.f32.mrb[0].mxu0
        %v702 = vadd.f32 0.0, %v701
        %v703 = vpop.f32.mrb[0].mxu0
        %704 = vmatprep.mubr.f32.mxu0 0.0
        %705 = vmatmul.mubr.f32.gmra.mrb[0].mxu0 %v432
        %v706 = vpop.f32.mrb[0].mxu0
        %v707 = vadd.f32 0.0, %v706
        %v708 = vpop.f32.mrb[0].mxu0
        %709 = vmatprep.mubr.f32.mxu0 0.0
        %710 = vmatmul.mubr.f32.gmra.mrb[0].mxu0 %v433
        %v711 = vpop.f32.mrb[0].mxu0
        %v712 = vadd.f32 0.0, %v711
        %v713 = vpop.f32.mrb[0].mxu0
        %714 = vmatprep.mubr.f32.mxu0 0.0
        %715 = vmatmul.mubr.f32.gmra.mrb[0].mxu0 %v434
        %v716 = vpop.f32.mrb[0].mxu0
        %v717 = vadd.f32 0.0, %v716
        %v718 = vpop.f32.mrb[0].mxu0
        %719 = vmatprep.mubr.f32.mxu0 0.0
        %720 = vmatmul.mubr.f32.gmra.mrb[0].mxu0 %v435
        %v721 = vpop.f32.mrb[0].mxu0
        %v722 = vadd.f32 0.0, %v721
        %v723 = vpop.f32.mrb[0].mxu0
        %724 = vmatprep.mubr.f32.mxu0 0.0
        %725 = vmatmul.mubr.f32.gmra.mrb[0].mxu0 %v436
        %v726 = vpop.f32.mrb[0].mxu0
        %v727 = vadd.f32 0.0, %v726
        %v728 = vpop.f32.mrb[0].mxu0
        %729 = vmatprep.mubr.f32.mxu0 0.0
        %730 = vmatmul.mubr.f32.gmra.mrb[0].mxu0 %v437
        %v731 = vpop.f32.mrb[0].mxu0
        %v732 = vadd.f32 0.0, %v731
        %v733 = vpop.f32.mrb[0].mxu0
        %734 = vmatprep.mubr.f32.mxu0 0.0
        %735 = vmatmul.mubr.f32.gmra.mrb[0].mxu0 %v438
        %v736 = vpop.f32.mrb[0].mxu0
        %v737 = vadd.f32 0.0, %v736
        %v738 = vpop.f32.mrb[0].mxu0
        %739 = vmatprep.mubr.f32.mxu0 0.0
        %740 = vmatmul.mubr.f32.gmra.mrb[0].mxu0 %v439
        %v741 = vpop.f32.mrb[0].mxu0
        %v742 = vadd.f32 0.0, %v741
        %v743 = vpop.f32.mrb[0].mxu0
        %744 = vmatprep.mubr.f32.mxu0 0.0
        %745 = vmatmul.mubr.f32.gmra.mrb[0].mxu0 %v440
        %v746 = vpop.f32.mrb[0].mxu0
        %v747 = vadd.f32 0.0, %v746
        %v748 = vpop.f32.mrb[0].mxu0
        %749 = vmatprep.mubr.f32.mxu0 0.0
        %750 = vmatmul.mubr.f32.gmra.mrb[0].mxu0 %v441
        %v751 = vpop.f32.mrb[0].mxu0
        %v752 = vadd.f32 0.0, %v751
        %v753 = vpop.f32.mrb[0].mxu0
        %754 = vmatprep.mubr.f32.mxu0 0.0
        %755 = vmatmul.mubr.f32.gmra.mrb[0].mxu0 %v442
        %v756 = vpop.f32.mrb[0].mxu0
        %v757 = vadd.f32 0.0, %v756
        %v758 = vpop.f32.mrb[0].mxu0
        %759 = vmatprep.mubr.f32.mxu0 0.0
        %760 = vmatmul.mubr.f32.gmra.mrb[0].mxu0 %v443
        %v761 = vpop.f32.mrb[0].mxu0
        %v762 = vadd.f32 0.0, %v761
        %v763 = vpop.f32.mrb[0].mxu0
        %764 = vmatprep.mubr.f32.mxu0 0.0
        %765 = vmatmul.mubr.f32.gmra.mrb[0].mxu0 %v444
        %v766 = vpop.f32.mrb[0].mxu0
        %v767 = vadd.f32 0.0, %v766
        %v768 = vpop.f32.mrb[0].mxu0
        %769 = vmatprep.mubr.f32.mxu0 0.0
        %770 = vmatmul.mubr.f32.gmra.mrb[0].mxu0 %v445
        %v771 = vpop.f32.mrb[0].mxu0
        %v772 = vadd.f32 0.0, %v771
        %v773 = vpop.f32.mrb[0].mxu0
        %774 = vmatprep.mubr.f32.mxu0 0.0
        %775 = vmatmul.mubr.f32.gmra.mrb[0].mxu0 %v446
        %v776 = vpop.f32.mrb[0].mxu0
        %v777 = vadd.f32 0.0, %v776
        %v778 = vpop.f32.mrb[0].mxu0
        %779 = vmatprep.mubr.f32.mxu0 0.0
        %780 = vmatmul.mubr.f32.gmra.mrb[0].mxu0 %v447
        %v781 = vpop.f32.mrb[0].mxu0
        %v782 = vadd.f32 0.0, %v781
        %v783 = vpop.f32.mrb[0].mxu0
        %784 = vmatprep.mubr.f32.mxu0 0.0
        %785 = vmatmul.mubr.f32.gmra.mrb[0].mxu0 %v448
        %v786 = vpop.f32.mrb[0].mxu0
        %v787 = vadd.f32 0.0, %v786
        %v788 = vpop.f32.mrb[0].mxu0
        %789 = vmatprep.mubr.f32.mxu0 0.0
        %790 = vmatmul.mubr.f32.gmra.mrb[0].mxu0 %v449
        %v791 = vpop.f32.mrb[0].mxu0
        %v792 = vadd.f32 0.0, %v791
        %v793 = vpop.f32.mrb[0].mxu0
        %794 = vmatprep.mubr.f32.mxu0 0.0
        %795 = vmatmul.mubr.f32.gmra.mrb[0].mxu0 %v450
        %v796 = vpop.f32.mrb[0].mxu0
        %v797 = vadd.f32 0.0, %v796
        %v798 = vpop.f32.mrb[0].mxu0
        %799 = vmatprep.mubr.f32.mxu0 0.0
        %800 = vmatmul.mubr.f32.gmra.mrb[0].mxu0 %v451
        %v801 = vpop.f32.mrb[0].mxu0
        %v802 = vadd.f32 0.0, %v801
        %v803 = vpop.f32.mrb[0].mxu0
        %804 = vmatprep.mubr.f32.mxu0 0.0
        %805 = vmatmul.mubr.f32.gmra.mrb[0].mxu0 %v452
        %v806 = vpop.f32.mrb[0].mxu0
        %v807 = vadd.f32 0.0, %v806
        %v808 = vpop.f32.mrb[0].mxu0
        %809 = vmatprep.mubr.f32.mxu0 0.0
        %810 = vmatmul.mubr.f32.gmra.mrb[0].mxu0 %v453
        %v811 = vpop.f32.mrb[0].mxu0
        %v812 = vadd.f32 0.0, %v811
        %v813 = vpop.f32.mrb[0].mxu0
        %814 = vmatprep.mubr.f32.mxu0 0.0
        %815 = vmatmul.mubr.f32.gmra.mrb[0].mxu0 %v454
        %v816 = vpop.f32.mrb[0].mxu0
        %v817 = vadd.f32 0.0, %v816
        %v818 = vpop.f32.mrb[0].mxu0
        %819 = vmatprep.mubr.f32.mxu0 0.0
        %820 = vmatmul.mubr.f32.gmra.mrb[0].mxu0 %v455
        %v821 = vpop.f32.mrb[0].mxu0
        %v822 = vadd.f32 0.0, %v821
        %v823 = vpop.f32.mrb[0].mxu0
        %824 = vmatprep.mubr.f32.mxu0 0.0
        %825 = vmatmul.mubr.f32.gmra.mrb[0].mxu0 %v456
        %v826 = vpop.f32.mrb[0].mxu0
        %v827 = vadd.f32 0.0, %v826
        %v828 = vpop.f32.mrb[0].mxu0
        %829 = vmatprep.mubr.f32.mxu0 0.0
        %830 = vmatmul.mubr.f32.gmra.mrb[0].mxu0 %v457
        %v831 = vpop.f32.mrb[0].mxu0
        %v832 = vadd.f32 0.0, %v831
        %v833 = vpop.f32.mrb[0].mxu0
        %834 = vmatprep.mubr.f32.mxu0 0.0
        %835 = vmatmul.mubr.f32.gmra.mrb[0].mxu0 %v458
        %v836 = vpop.f32.mrb[0].mxu0
        %v837 = vadd.f32 0.0, %v836
        %v838 = vpop.f32.mrb[0].mxu0
        %839 = vmatprep.mubr.f32.mxu0 0.0
        %840 = vmatmul.mubr.f32.gmra.mrb[0].mxu0 %v459
        %v841 = vpop.f32.mrb[0].mxu0
        %v842 = vadd.f32 0.0, %v841
        %v843 = vpop.f32.mrb[0].mxu0
        %844 = vmatprep.mubr.f32.mxu0 0.0
        %845 = vmatmul.mubr.f32.gmra.mrb[0].mxu0 %v460
        %v846 = vpop.f32.mrb[0].mxu0
        %v847 = vadd.f32 0.0, %v846
        %v848 = vpop.f32.mrb[0].mxu0
        %849 = vmatprep.mubr.f32.mxu0 0.0
        %850 = vmatmul.mubr.f32.gmra.mrb[0].mxu0 %v461
        %v851 = vpop.f32.mrb[0].mxu0
        %v852 = vadd.f32 0.0, %v851
        %v853 = vpop.f32.mrb[0].mxu0
        %854 = vmatprep.mubr.f32.mxu0 0.0
        %855 = vmatmul.mubr.f32.gmra.mrb[0].mxu0 %v462
        %v856 = vpop.f32.mrb[0].mxu0
        %v857 = vadd.f32 0.0, %v856
        %v858 = vpop.f32.mrb[0].mxu0
        %859 = vmatprep.mubr.f32.mxu0 0.0
        %860 = vmatmul.mubr.f32.gmra.mrb[0].mxu0 %v463
        %v861 = vpop.f32.mrb[0].mxu0
        %v862 = vadd.f32 0.0, %v861
        %v863 = vpop.f32.mrb[0].mxu0
        %864 = vdwg.mxu0
        %v865 = vadd.f32 %v336, %v547
        %v866 = vadd.f32 %v337, %v552
        %v867 = vadd.f32 %v338, %v557
        %v868 = vadd.f32 %v339, %v562
        %v869 = vadd.f32 %v340, %v567
        %v870 = vadd.f32 %v341, %v572
        %v871 = vadd.f32 %v342, %v577
        %v872 = vadd.f32 %v343, %v582
        %v873 = vadd.f32 %v344, %v587
        %v874 = vadd.f32 %v345, %v592
        %v875 = vadd.f32 %v346, %v597
        %v876 = vadd.f32 %v347, %v602
        %v877 = vadd.f32 %v348, %v607
        %v878 = vadd.f32 %v349, %v612
        %v879 = vadd.f32 %v350, %v617
        %v880 = vadd.f32 %v351, %v622
        %v881 = vadd.f32 %v352, %v627
        %v882 = vadd.f32 %v353, %v632
        %v883 = vadd.f32 %v354, %v637
        %v884 = vadd.f32 %v355, %v642
        %v885 = vadd.f32 %v356, %v647
        %v886 = vadd.f32 %v357, %v652
        %v887 = vadd.f32 %v358, %v657
        %v888 = vadd.f32 %v359, %v662
        %v889 = vadd.f32 %v360, %v667
        %v890 = vadd.f32 %v361, %v672
        %v891 = vadd.f32 %v362, %v677
        %v892 = vadd.f32 %v363, %v682
        %v893 = vadd.f32 %v364, %v687
        %v894 = vadd.f32 %v365, %v692
        %v895 = vadd.f32 %v366, %v697
        %v896 = vadd.f32 %v367, %v702
        %v897 = vadd.f32 %v368, %v707
        %v898 = vadd.f32 %v369, %v712
        %v899 = vadd.f32 %v370, %v717
        %v900 = vadd.f32 %v371, %v722
        %v901 = vadd.f32 %v372, %v727
        %v902 = vadd.f32 %v373, %v732
        %v903 = vadd.f32 %v374, %v737
        %v904 = vadd.f32 %v375, %v742
        %v905 = vadd.f32 %v376, %v747
        %v906 = vadd.f32 %v377, %v752
        %v907 = vadd.f32 %v378, %v757
        %v908 = vadd.f32 %v379, %v762
        %v909 = vadd.f32 %v380, %v767
        %v910 = vadd.f32 %v381, %v772
        %v911 = vadd.f32 %v382, %v777
        %v912 = vadd.f32 %v383, %v782
        %v913 = vadd.f32 %v384, %v787
        %v914 = vadd.f32 %v385, %v792
        %v915 = vadd.f32 %v386, %v797
        %v916 = vadd.f32 %v387, %v802
        %v917 = vadd.f32 %v388, %v807
        %v918 = vadd.f32 %v389, %v812
        %v919 = vadd.f32 %v390, %v817
        %v920 = vadd.f32 %v391, %v822
        %v921 = vadd.f32 %v392, %v827
        %v922 = vadd.f32 %v393, %v832
        %v923 = vadd.f32 %v394, %v837
        %v924 = vadd.f32 %v395, %v842
        %v925 = vadd.f32 %v396, %v847
        %v926 = vadd.f32 %v397, %v852
        %v927 = vadd.f32 %v398, %v857
        %v928 = vadd.f32 %v399, %v862
        %929 = vst [vmem:[#allocation2] sm:$0xff] %v865
        %930 = vst [vmem:[#allocation2 + $0x8] sm:$0xff] %v866
        %931 = vst [vmem:[#allocation2 + $0x10] sm:$0xff] %v867
        %932 = vst [vmem:[#allocation2 + $0x18] sm:$0xff] %v868
        %933 = vst [vmem:[#allocation2 + $0x20] sm:$0xff] %v869
        %934 = vst [vmem:[#allocation2 + $0x28] sm:$0xff] %v870
        %935 = vst [vmem:[#allocation2 + $0x30] sm:$0xff] %v871
        %936 = vst [vmem:[#allocation2 + $0x38] sm:$0xff] %v872
        %937 = vst [vmem:[#allocation2 + $0x40] sm:$0xff] %v873
        %938 = vst [vmem:[#allocation2 + $0x48] sm:$0xff] %v874
        %939 = vst [vmem:[#allocation2 + $0x50] sm:$0xff] %v875
        %940 = vst [vmem:[#allocation2 + $0x58] sm:$0xff] %v876
        %941 = vst [vmem:[#allocation2 + $0x60] sm:$0xff] %v877
        %942 = vst [vmem:[#allocation2 + $0x68] sm:$0xff] %v878
        %943 = vst [vmem:[#allocation2 + $0x70] sm:$0xff] %v879
        %944 = vst [vmem:[#allocation2 + $0x78] sm:$0xff] %v880
        %945 = vst [vmem:[#allocation2 + $0x80] sm:$0xff] %v881
        %946 = vst [vmem:[#allocation2 + $0x88] sm:$0xff] %v882
        %947 = vst [vmem:[#allocation2 + $0x90] sm:$0xff] %v883
        %948 = vst [vmem:[#allocation2 + $0x98] sm:$0xff] %v884
        %949 = vst [vmem:[#allocation2 + $0xa0] sm:$0xff] %v885
        %950 = vst [vmem:[#allocation2 + $0xa8] sm:$0xff] %v886
        %951 = vst [vmem:[#allocation2 + $0xb0] sm:$0xff] %v887
        %952 = vst [vmem:[#allocation2 + $0xb8] sm:$0xff] %v888
        %953 = vst [vmem:[#allocation2 + $0xc0] sm:$0xff] %v889
        %954 = vst [vmem:[#allocation2 + $0xc8] sm:$0xff] %v890
        %955 = vst [vmem:[#allocation2 + $0xd0] sm:$0xff] %v891
        %956 = vst [vmem:[#allocation2 + $0xd8] sm:$0xff] %v892
        %957 = vst [vmem:[#allocation2 + $0xe0] sm:$0xff] %v893
        %958 = vst [vmem:[#allocation2 + $0xe8] sm:$0xff] %v894
        %959 = vst [vmem:[#allocation2 + $0xf0] sm:$0xff] %v895
        %960 = vst [vmem:[#allocation2 + $0xf8] sm:$0xff] %v896
        %961 = vst [vmem:[#allocation2 + $0x100] sm:$0xff] %v897
        %962 = vst [vmem:[#allocation2 + $0x108] sm:$0xff] %v898
        %963 = vst [vmem:[#allocation2 + $0x110] sm:$0xff] %v899
        %964 = vst [vmem:[#allocation2 + $0x118] sm:$0xff] %v900
        %965 = vst [vmem:[#allocation2 + $0x120] sm:$0xff] %v901
        %966 = vst [vmem:[#allocation2 + $0x128] sm:$0xff] %v902
        %967 = vst [vmem:[#allocation2 + $0x130] sm:$0xff] %v903
        %968 = vst [vmem:[#allocation2 + $0x138] sm:$0xff] %v904
        %969 = vst [vmem:[#allocation2 + $0x140] sm:$0xff] %v905
        %970 = vst [vmem:[#allocation2 + $0x148] sm:$0xff] %v906
        %971 = vst [vmem:[#allocation2 + $0x150] sm:$0xff] %v907
        %972 = vst [vmem:[#allocation2 + $0x158] sm:$0xff] %v908
        %973 = vst [vmem:[#allocation2 + $0x160] sm:$0xff] %v909
        %974 = vst [vmem:[#allocation2 + $0x168] sm:$0xff] %v910
        %975 = vst [vmem:[#allocation2 + $0x170] sm:$0xff] %v911
        %976 = vst [vmem:[#allocation2 + $0x178] sm:$0xff] %v912
        %977 = vst [vmem:[#allocation2 + $0x180] sm:$0xff] %v913
        %978 = vst [vmem:[#allocation2 + $0x188] sm:$0xff] %v914
        %979 = vst [vmem:[#allocation2 + $0x190] sm:$0xff] %v915
        %980 = vst [vmem:[#allocation2 + $0x198] sm:$0xff] %v916
        %981 = vst [vmem:[#allocation2 + $0x1a0] sm:$0xff] %v917
        %982 = vst [vmem:[#allocation2 + $0x1a8] sm:$0xff] %v918
        %983 = vst [vmem:[#allocation2 + $0x1b0] sm:$0xff] %v919
        %984 = vst [vmem:[#allocation2 + $0x1b8] sm:$0xff] %v920
        %985 = vst [vmem:[#allocation2 + $0x1c0] sm:$0xff] %v921
        %986 = vst [vmem:[#allocation2 + $0x1c8] sm:$0xff] %v922
        %987 = vst [vmem:[#allocation2 + $0x1d0] sm:$0xff] %v923
        %988 = vst [vmem:[#allocation2 + $0x1d8] sm:$0xff] %v924
        %989 = vst [vmem:[#allocation2 + $0x1e0] sm:$0xff] %v925
        %990 = vst [vmem:[#allocation2 + $0x1e8] sm:$0xff] %v926
        %991 = vst [vmem:[#allocation2 + $0x1f0] sm:$0xff] %v927
        %992 = vst [vmem:[#allocation2 + $0x1f8] sm:$0xff] %v928
        // Predicated region
        $region49: #{tpu_custom_call.1} parent=31 // pred_check
          %p993 = pneg %p268
        $region50: #{tpu_custom_call.1} parent=31 // pred_check_branch
          %995 = sbr.rel (%p993) target = $region52
        $region51: #{tpu_custom_call.1} parent=31 // pred_region
          %v996 = vld [vmem:[#allocation2] sm:$0xff]
          %v997 = vld [vmem:[#allocation2 + $0x8] sm:$0xff]
          %v998 = vld [vmem:[#allocation2 + $0x10] sm:$0xff]
          %v999 = vld [vmem:[#allocation2 + $0x18] sm:$0xff]
          %v1000 = vld [vmem:[#allocation2 + $0x20] sm:$0xff]
          %v1001 = vld [vmem:[#allocation2 + $0x28] sm:$0xff]
          %v1002 = vld [vmem:[#allocation2 + $0x30] sm:$0xff]
          %v1003 = vld [vmem:[#allocation2 + $0x38] sm:$0xff]
          %v1004 = vld [vmem:[#allocation2 + $0x40] sm:$0xff]
          %v1005 = vld [vmem:[#allocation2 + $0x48] sm:$0xff]
          %v1006 = vld [vmem:[#allocation2 + $0x50] sm:$0xff]
          %v1007 = vld [vmem:[#allocation2 + $0x58] sm:$0xff]
          %v1008 = vld [vmem:[#allocation2 + $0x60] sm:$0xff]
          %v1009 = vld [vmem:[#allocation2 + $0x68] sm:$0xff]
          %v1010 = vld [vmem:[#allocation2 + $0x70] sm:$0xff]
          %v1011 = vld [vmem:[#allocation2 + $0x78] sm:$0xff]
          %v1012 = vld [vmem:[#allocation2 + $0x80] sm:$0xff]
          %v1013 = vld [vmem:[#allocation2 + $0x88] sm:$0xff]
          %v1014 = vld [vmem:[#allocation2 + $0x90] sm:$0xff]
          %v1015 = vld [vmem:[#allocation2 + $0x98] sm:$0xff]
          %v1016 = vld [vmem:[#allocation2 + $0xa0] sm:$0xff]
          %v1017 = vld [vmem:[#allocation2 + $0xa8] sm:$0xff]
          %v1018 = vld [vmem:[#allocation2 + $0xb0] sm:$0xff]
          %v1019 = vld [vmem:[#allocation2 + $0xb8] sm:$0xff]
          %v1020 = vld [vmem:[#allocation2 + $0xc0] sm:$0xff]
          %v1021 = vld [vmem:[#allocation2 + $0xc8] sm:$0xff]
          %v1022 = vld [vmem:[#allocation2 + $0xd0] sm:$0xff]
          %v1023 = vld [vmem:[#allocation2 + $0xd8] sm:$0xff]
          %v1024 = vld [vmem:[#allocation2 + $0xe0] sm:$0xff]
          %v1025 = vld [vmem:[#allocation2 + $0xe8] sm:$0xff]
          %v1026 = vld [vmem:[#allocation2 + $0xf0] sm:$0xff]
          %v1027 = vld [vmem:[#allocation2 + $0xf8] sm:$0xff]
          %v1028 = vld [vmem:[#allocation2 + $0x100] sm:$0xff]
          %v1029 = vld [vmem:[#allocation2 + $0x108] sm:$0xff]
          %v1030 = vld [vmem:[#allocation2 + $0x110] sm:$0xff]
          %v1031 = vld [vmem:[#allocation2 + $0x118] sm:$0xff]
          %v1032 = vld [vmem:[#allocation2 + $0x120] sm:$0xff]
          %v1033 = vld [vmem:[#allocation2 + $0x128] sm:$0xff]
          %v1034 = vld [vmem:[#allocation2 + $0x130] sm:$0xff]
          %v1035 = vld [vmem:[#allocation2 + $0x138] sm:$0xff]
          %v1036 = vld [vmem:[#allocation2 + $0x140] sm:$0xff]
          %v1037 = vld [vmem:[#allocation2 + $0x148] sm:$0xff]
          %v1038 = vld [vmem:[#allocation2 + $0x150] sm:$0xff]
          %v1039 = vld [vmem:[#allocation2 + $0x158] sm:$0xff]
          %v1040 = vld [vmem:[#allocation2 + $0x160] sm:$0xff]
          %v1041 = vld [vmem:[#allocation2 + $0x168] sm:$0xff]
          %v1042 = vld [vmem:[#allocation2 + $0x170] sm:$0xff]
          %v1043 = vld [vmem:[#allocation2 + $0x178] sm:$0xff]
          %v1044 = vld [vmem:[#allocation2 + $0x180] sm:$0xff]
          %v1045 = vld [vmem:[#allocation2 + $0x188] sm:$0xff]
          %v1046 = vld [vmem:[#allocation2 + $0x190] sm:$0xff]
          %v1047 = vld [vmem:[#allocation2 + $0x198] sm:$0xff]
          %v1048 = vld [vmem:[#allocation2 + $0x1a0] sm:$0xff]
          %v1049 = vld [vmem:[#allocation2 + $0x1a8] sm:$0xff]
          %v1050 = vld [vmem:[#allocation2 + $0x1b0] sm:$0xff]
          %v1051 = vld [vmem:[#allocation2 + $0x1b8] sm:$0xff]
          %v1052 = vld [vmem:[#allocation2 + $0x1c0] sm:$0xff]
          %v1053 = vld [vmem:[#allocation2 + $0x1c8] sm:$0xff]
          %v1054 = vld [vmem:[#allocation2 + $0x1d0] sm:$0xff]
          %v1055 = vld [vmem:[#allocation2 + $0x1d8] sm:$0xff]
          %v1056 = vld [vmem:[#allocation2 + $0x1e0] sm:$0xff]
          %v1057 = vld [vmem:[#allocation2 + $0x1e8] sm:$0xff]
          %v1058 = vld [vmem:[#allocation2 + $0x1f0] sm:$0xff]
          %v1059 = vld [vmem:[#allocation2 + $0x1f8] sm:$0xff]
          %v1060 = vld [vmem:[%s236] sm:$0xff]
          %v1061 = vld [vmem:[%s236 + $0x8] sm:$0xff]
          %v1062 = vld [vmem:[%s236 + $0x10] sm:$0xff]
          %v1063 = vld [vmem:[%s236 + $0x18] sm:$0xff]
          %v1064 = vld [vmem:[%s236 + $0x20] sm:$0xff]
          %v1065 = vld [vmem:[%s236 + $0x28] sm:$0xff]
          %v1066 = vld [vmem:[%s236 + $0x30] sm:$0xff]
          %v1067 = vld [vmem:[%s236 + $0x38] sm:$0xff]
          %v1068 = vld [vmem:[%s236 + $0x40] sm:$0xff]
          %v1069 = vld [vmem:[%s236 + $0x48] sm:$0xff]
          %v1070 = vld [vmem:[%s236 + $0x50] sm:$0xff]
          %v1071 = vld [vmem:[%s236 + $0x58] sm:$0xff]
          %v1072 = vld [vmem:[%s236 + $0x60] sm:$0xff]
          %v1073 = vld [vmem:[%s236 + $0x68] sm:$0xff]
          %v1074 = vld [vmem:[%s236 + $0x70] sm:$0xff]
          %v1075 = vld [vmem:[%s236 + $0x78] sm:$0xff]
          %v1076 = vld [vmem:[%s236 + $0x80] sm:$0xff]
          %v1077 = vld [vmem:[%s236 + $0x88] sm:$0xff]
          %v1078 = vld [vmem:[%s236 + $0x90] sm:$0xff]
          %v1079 = vld [vmem:[%s236 + $0x98] sm:$0xff]
          %v1080 = vld [vmem:[%s236 + $0xa0] sm:$0xff]
          %v1081 = vld [vmem:[%s236 + $0xa8] sm:$0xff]
          %v1082 = vld [vmem:[%s236 + $0xb0] sm:$0xff]
          %v1083 = vld [vmem:[%s236 + $0xb8] sm:$0xff]
          %v1084 = vld [vmem:[%s236 + $0xc0] sm:$0xff]
          %v1085 = vld [vmem:[%s236 + $0xc8] sm:$0xff]
          %v1086 = vld [vmem:[%s236 + $0xd0] sm:$0xff]
          %v1087 = vld [vmem:[%s236 + $0xd8] sm:$0xff]
          %v1088 = vld [vmem:[%s236 + $0xe0] sm:$0xff]
          %v1089 = vld [vmem:[%s236 + $0xe8] sm:$0xff]
          %v1090 = vld [vmem:[%s236 + $0xf0] sm:$0xff]
          %v1091 = vld [vmem:[%s236 + $0xf8] sm:$0xff]
          %v1092 = vld [vmem:[%s236 + $0x100] sm:$0xff]
          %v1093 = vld [vmem:[%s236 + $0x108] sm:$0xff]
          %v1094 = vld [vmem:[%s236 + $0x110] sm:$0xff]
          %v1095 = vld [vmem:[%s236 + $0x118] sm:$0xff]
          %v1096 = vld [vmem:[%s236 + $0x120] sm:$0xff]
          %v1097 = vld [vmem:[%s236 + $0x128] sm:$0xff]
          %v1098 = vld [vmem:[%s236 + $0x130] sm:$0xff]
          %v1099 = vld [vmem:[%s236 + $0x138] sm:$0xff]
          %v1100 = vld [vmem:[%s236 + $0x140] sm:$0xff]
          %v1101 = vld [vmem:[%s236 + $0x148] sm:$0xff]
          %v1102 = vld [vmem:[%s236 + $0x150] sm:$0xff]
          %v1103 = vld [vmem:[%s236 + $0x158] sm:$0xff]
          %v1104 = vld [vmem:[%s236 + $0x160] sm:$0xff]
          %v1105 = vld [vmem:[%s236 + $0x168] sm:$0xff]
          %v1106 = vld [vmem:[%s236 + $0x170] sm:$0xff]
          %v1107 = vld [vmem:[%s236 + $0x178] sm:$0xff]
          %v1108 = vld [vmem:[%s236 + $0x180] sm:$0xff]
          %v1109 = vld [vmem:[%s236 + $0x188] sm:$0xff]
          %v1110 = vld [vmem:[%s236 + $0x190] sm:$0xff]
          %v1111 = vld [vmem:[%s236 + $0x198] sm:$0xff]
          %v1112 = vld [vmem:[%s236 + $0x1a0] sm:$0xff]
          %v1113 = vld [vmem:[%s236 + $0x1a8] sm:$0xff]
          %v1114 = vld [vmem:[%s236 + $0x1b0] sm:$0xff]
          %v1115 = vld [vmem:[%s236 + $0x1b8] sm:$0xff]
          %v1116 = vld [vmem:[%s236 + $0x1c0] sm:$0xff]
          %v1117 = vld [vmem:[%s236 + $0x1c8] sm:$0xff]
          %v1118 = vld [vmem:[%s236 + $0x1d0] sm:$0xff]
          %v1119 = vld [vmem:[%s236 + $0x1d8] sm:$0xff]
          %v1120 = vld [vmem:[%s236 + $0x1e0] sm:$0xff]
          %v1121 = vld [vmem:[%s236 + $0x1e8] sm:$0xff]
          %v1122 = vld [vmem:[%s236 + $0x1f0] sm:$0xff]
          %v1123 = vld [vmem:[%s236 + $0x1f8] sm:$0xff]
          %v1124 = vadd.f32 %v996, %v1060
          %v1125 = vadd.f32 %v997, %v1061
          %v1126 = vadd.f32 %v998, %v1062
          %v1127 = vadd.f32 %v999, %v1063
          %v1128 = vadd.f32 %v1000, %v1064
          %v1129 = vadd.f32 %v1001, %v1065
          %v1130 = vadd.f32 %v1002, %v1066
          %v1131 = vadd.f32 %v1003, %v1067
          %v1132 = vadd.f32 %v1004, %v1068
          %v1133 = vadd.f32 %v1005, %v1069
          %v1134 = vadd.f32 %v1006, %v1070
          %v1135 = vadd.f32 %v1007, %v1071
          %v1136 = vadd.f32 %v1008, %v1072
          %v1137 = vadd.f32 %v1009, %v1073
          %v1138 = vadd.f32 %v1010, %v1074
          %v1139 = vadd.f32 %v1011, %v1075
          %v1140 = vadd.f32 %v1012, %v1076
          %v1141 = vadd.f32 %v1013, %v1077
          %v1142 = vadd.f32 %v1014, %v1078
          %v1143 = vadd.f32 %v1015, %v1079
          %v1144 = vadd.f32 %v1016, %v1080
          %v1145 = vadd.f32 %v1017, %v1081
          %v1146 = vadd.f32 %v1018, %v1082
          %v1147 = vadd.f32 %v1019, %v1083
          %v1148 = vadd.f32 %v1020, %v1084
          %v1149 = vadd.f32 %v1021, %v1085
          %v1150 = vadd.f32 %v1022, %v1086
          %v1151 = vadd.f32 %v1023, %v1087
          %v1152 = vadd.f32 %v1024, %v1088
          %v1153 = vadd.f32 %v1025, %v1089
          %v1154 = vadd.f32 %v1026, %v1090
          %v1155 = vadd.f32 %v1027, %v1091
          %v1156 = vadd.f32 %v1028, %v1092
          %v1157 = vadd.f32 %v1029, %v1093
          %v1158 = vadd.f32 %v1030, %v1094
          %v1159 = vadd.f32 %v1031, %v1095
          %v1160 = vadd.f32 %v1032, %v1096
          %v1161 = vadd.f32 %v1033, %v1097
          %v1162 = vadd.f32 %v1034, %v1098
          %v1163 = vadd.f32 %v1035, %v1099
          %v1164 = vadd.f32 %v1036, %v1100
          %v1165 = vadd.f32 %v1037, %v1101
          %v1166 = vadd.f32 %v1038, %v1102
          %v1167 = vadd.f32 %v1039, %v1103
          %v1168 = vadd.f32 %v1040, %v1104
          %v1169 = vadd.f32 %v1041, %v1105
          %v1170 = vadd.f32 %v1042, %v1106
          %v1171 = vadd.f32 %v1043, %v1107
          %v1172 = vadd.f32 %v1044, %v1108
          %v1173 = vadd.f32 %v1045, %v1109
          %v1174 = vadd.f32 %v1046, %v1110
          %v1175 = vadd.f32 %v1047, %v1111
          %v1176 = vadd.f32 %v1048, %v1112
          %v1177 = vadd.f32 %v1049, %v1113
          %v1178 = vadd.f32 %v1050, %v1114
          %v1179 = vadd.f32 %v1051, %v1115
          %v1180 = vadd.f32 %v1052, %v1116
          %v1181 = vadd.f32 %v1053, %v1117
          %v1182 = vadd.f32 %v1054, %v1118
          %v1183 = vadd.f32 %v1055, %v1119
          %v1184 = vadd.f32 %v1056, %v1120
          %v1185 = vadd.f32 %v1057, %v1121
          %v1186 = vadd.f32 %v1058, %v1122
          %v1187 = vadd.f32 %v1059, %v1123
          %1188 = vst [vmem:[%s263] sm:$0xff] %v1124
          %1189 = vst [vmem:[%s263 + $0x8] sm:$0xff] %v1125
          %1190 = vst [vmem:[%s263 + $0x10] sm:$0xff] %v1126
          %1191 = vst [vmem:[%s263 + $0x18] sm:$0xff] %v1127
          %1192 = vst [vmem:[%s263 + $0x20] sm:$0xff] %v1128
          %1193 = vst [vmem:[%s263 + $0x28] sm:$0xff] %v1129
          %1194 = vst [vmem:[%s263 + $0x30] sm:$0xff] %v1130
          %1195 = vst [vmem:[%s263 + $0x38] sm:$0xff] %v1131
          %1196 = vst [vmem:[%s263 + $0x40] sm:$0xff] %v1132
          %1197 = vst [vmem:[%s263 + $0x48] sm:$0xff] %v1133
          %1198 = vst [vmem:[%s263 + $0x50] sm:$0xff] %v1134
          %1199 = vst [vmem:[%s263 + $0x58] sm:$0xff] %v1135
          %1200 = vst [vmem:[%s263 + $0x60] sm:$0xff] %v1136
          %1201 = vst [vmem:[%s263 + $0x68] sm:$0xff] %v1137
          %1202 = vst [vmem:[%s263 + $0x70] sm:$0xff] %v1138
          %1203 = vst [vmem:[%s263 + $0x78] sm:$0xff] %v1139
          %1204 = vst [vmem:[%s263 + $0x80] sm:$0xff] %v1140
          %1205 = vst [vmem:[%s263 + $0x88] sm:$0xff] %v1141
          %1206 = vst [vmem:[%s263 + $0x90] sm:$0xff] %v1142
          %1207 = vst [vmem:[%s263 + $0x98] sm:$0xff] %v1143
          %1208 = vst [vmem:[%s263 + $0xa0] sm:$0xff] %v1144
          %1209 = vst [vmem:[%s263 + $0xa8] sm:$0xff] %v1145
          %1210 = vst [vmem:[%s263 + $0xb0] sm:$0xff] %v1146
          %1211 = vst [vmem:[%s263 + $0xb8] sm:$0xff] %v1147
          %1212 = vst [vmem:[%s263 + $0xc0] sm:$0xff] %v1148
          %1213 = vst [vmem:[%s263 + $0xc8] sm:$0xff] %v1149
          %1214 = vst [vmem:[%s263 + $0xd0] sm:$0xff] %v1150
          %1215 = vst [vmem:[%s263 + $0xd8] sm:$0xff] %v1151
          %1216 = vst [vmem:[%s263 + $0xe0] sm:$0xff] %v1152
          %1217 = vst [vmem:[%s263 + $0xe8] sm:$0xff] %v1153
          %1218 = vst [vmem:[%s263 + $0xf0] sm:$0xff] %v1154
          %1219 = vst [vmem:[%s263 + $0xf8] sm:$0xff] %v1155
          %1220 = vst [vmem:[%s263 + $0x100] sm:$0xff] %v1156
          %1221 = vst [vmem:[%s263 + $0x108] sm:$0xff] %v1157
          %1222 = vst [vmem:[%s263 + $0x110] sm:$0xff] %v1158
          %1223 = vst [vmem:[%s263 + $0x118] sm:$0xff] %v1159
          %1224 = vst [vmem:[%s263 + $0x120] sm:$0xff] %v1160
          %1225 = vst [vmem:[%s263 + $0x128] sm:$0xff] %v1161
          %1226 = vst [vmem:[%s263 + $0x130] sm:$0xff] %v1162
          %1227 = vst [vmem:[%s263 + $0x138] sm:$0xff] %v1163
          %1228 = vst [vmem:[%s263 + $0x140] sm:$0xff] %v1164
          %1229 = vst [vmem:[%s263 + $0x148] sm:$0xff] %v1165
          %1230 = vst [vmem:[%s263 + $0x150] sm:$0xff] %v1166
          %1231 = vst [vmem:[%s263 + $0x158] sm:$0xff] %v1167
          %1232 = vst [vmem:[%s263 + $0x160] sm:$0xff] %v1168
          %1233 = vst [vmem:[%s263 + $0x168] sm:$0xff] %v1169
          %1234 = vst [vmem:[%s263 + $0x170] sm:$0xff] %v1170
          %1235 = vst [vmem:[%s263 + $0x178] sm:$0xff] %v1171
          %1236 = vst [vmem:[%s263 + $0x180] sm:$0xff] %v1172
          %1237 = vst [vmem:[%s263 + $0x188] sm:$0xff] %v1173
          %1238 = vst [vmem:[%s263 + $0x190] sm:$0xff] %v1174
          %1239 = vst [vmem:[%s263 + $0x198] sm:$0xff] %v1175
          %1240 = vst [vmem:[%s263 + $0x1a0] sm:$0xff] %v1176
          %1241 = vst [vmem:[%s263 + $0x1a8] sm:$0xff] %v1177
          %1242 = vst [vmem:[%s263 + $0x1b0] sm:$0xff] %v1178
          %1243 = vst [vmem:[%s263 + $0x1b8] sm:$0xff] %v1179
          %1244 = vst [vmem:[%s263 + $0x1c0] sm:$0xff] %v1180
          %1245 = vst [vmem:[%s263 + $0x1c8] sm:$0xff] %v1181
          %1246 = vst [vmem:[%s263 + $0x1d0] sm:$0xff] %v1182
          %1247 = vst [vmem:[%s263 + $0x1d8] sm:$0xff] %v1183
          %1248 = vst [vmem:[%s263 + $0x1e0] sm:$0xff] %v1184
          %1249 = vst [vmem:[%s263 + $0x1e8] sm:$0xff] %v1185
          %1250 = vst [vmem:[%s263 + $0x1f0] sm:$0xff] %v1186
          %1251 = vst [vmem:[%s263 + $0x1f8] sm:$0xff] %v1187
        $region52: #{tpu_custom_call.1} parent=31 // pred_fallthru
          _
        %s1252 = sand.u32 %s121, 1
        %s1253 = scalar_lea.sflag [#allocation5], %s1252
        %s1254 = sand.u32 %s121, 1
        %s1255 = smul.addr %s1254, 512
        %s1256 = scalar_lea.vmem [#allocation9], %s1255
        // Predicated region
        $region53: #{tpu_custom_call.1} parent=31 // pred_check
          %p1257 = pneg %p131
        $region54: #{tpu_custom_call.1} parent=31 // pred_check_branch
          %1259 = sbr.rel (%p1257) target = $region56
        $region55: #{tpu_custom_call.1} parent=31 // pred_region
          %s1260 = smul.u32 64, %s25
          %s1262 = ssub.s32 8192, 8192
          %1263 = vsyncadd %s1253, %s1262
          %s1264 = smul.addr %s1260, 128
          %s1265 = scalar_lea.hbm %s3, %s1264
          %s1266 = sshll.u32 %s1256, 4
          %s1267 = int_to_ptr.vmem [resolvable:$true] %s1266
          %1272 = dma.vmem_to_hbm [thread:$0]  %s1267, 8192, %s1265, %s1253, 128, 128, 8
        $region56: #{tpu_custom_call.1} parent=31 // pred_fallthru
          _
      $region32: #{tpu_custom_call.1} parent=5 // pred_fallthru
        _
      %p1273 = scmp.le.s32.totalorder 2, %s16
      // Predicated region
      $region57: #{tpu_custom_call.1} parent=5 // pred_check
        %p1274 = pneg %p1273
      $region58: #{tpu_custom_call.1} parent=5 // pred_check_branch
        %1276 = sbr.rel (%p1274) target = $region60
      $region59: #{tpu_custom_call.1} parent=5 // pred_region
        %s1277 = ssub.s32 %s16, 2
        // Predicated region
        $region61: #{tpu_custom_call.1} parent=59 // pred_check
          %p1278 = pneg %p137
        $region62: #{tpu_custom_call.1} parent=59 // pred_check_branch
          %1280 = sbr.rel (%p1278) target = $region64
        $region63: #{tpu_custom_call.1} parent=59 // pred_region
          %s1281 = sand.u32 %s122, 1
          %s1282 = scalar_lea.sflag [#allocation5], %s1281
          %s1283 = sand.u32 %s122, 1
          %s1284 = smul.addr %s1283, 512
          %s1285 = scalar_lea.vmem [#allocation9], %s1284
          %1286 = dma.done %s1282, 8192
        $region64: #{tpu_custom_call.1} parent=59 // pred_fallthru
          _
      $region60: #{tpu_custom_call.1} parent=5 // pred_fallthru
        _
    $region6: #{tpu_custom_call.1} parent=1 // loop_footer
      %s20 = sadd.s32 1, %s16
    $region7: #{tpu_custom_call.1} parent=1 // loop_footer_branch
      %15 = sbr.rel target = $region3
    $region8: #{tpu_custom_call.1} parent=1 // loop_exit
      _
    %1287 = vsyncpa [#allocation4], 1
    %s1288 = scalar_lea.sflag [#allocation4], 1
    %1289 = vsyncpa %s1288, 1
    %1290 = vsyncpa [#allocation7], 1
    %1291 = vsyncpa [#allocation5], 1
    %s1292 = scalar_lea.sflag [#allocation5], 1
    %1293 = vsyncpa %s1292, 1

</llo_original>
